<compile_context>
chip_gen: v7x
topology: tpu7x:2x2x1
jax: 0.10.0
libtpu: 0.0.40
codegen_flags: <defaults>
</compile_context>

<pallas_src>
import jax
import jax.numpy as jnp
from jax.experimental import pallas as pl
from jax.experimental.pallas import tpu as pltpu

# ---------------------------------------------------------------------------
# Model dimensions (consistent with a (2, 4, 16, 16) NCHW input).
# ---------------------------------------------------------------------------
B, C, H, W = 2, 4, 16, 16
D_IN = C * H * W          # 1024 flattened features
D_HID = 128               # encoder / decoder hidden width
D_LAT = 32                # size of each latent head (z_id, z_cov)
L_PAD = 128               # latent lane width (lanes: [id 0:32 | cov 32:64 | zero pad])

_VMEM = pl.BlockSpec(memory_space=pltpu.MemorySpace.VMEM)

# Row offsets inside the packed bf16 weight buffer (all multiples of 8 -> tile aligned).
_OFF_EW1 = 0                       # enc_w1   : rows [0, 1024)
_OFF_EWL = D_IN                    # enc_wlat : rows [1024, 1152)
_OFF_DW1 = D_IN + D_HID            # dec_w1   : rows [1152, 1280)
_WPACK_ROWS = D_IN + 2 * D_HID     # 1280


# ---------------------------------------------------------------------------
# Single fused Pallas kernel: encode(x1,x2,x3) -> decode(4 combos) -> re-encode
# ---------------------------------------------------------------------------
def _fused_forward_kernel(x1_ref, x2_ref, x3_ref, wpack_ref, w2_hbm_ref,
                          bpack_ref, db2_ref,
                          xhat_ref, zlat_ref,
                          w2_vmem, w2_sem):
    # dec_w2 is only needed by the decoder's 2nd matmul -> start its DMA now and
    # overlap it with the encode matmuls.
    w2_cp = pltpu.make_async_copy(w2_hbm_ref, w2_vmem, w2_sem)
    w2_cp.start()

    # Zero-cost static views into the packed weight buffer.
    ew1 = wpack_ref.at[_OFF_EW1:_OFF_EW1 + D_IN, :]      # (1024, 128)
    ewl = wpack_ref.at[_OFF_EWL:_OFF_EWL + D_HID, :]     # (128, 128)  lanes>=64 are zero
    dw1 = wpack_ref.at[_OFF_DW1:_OFF_DW1 + D_HID, :]     # (128, 128)  rows>=64 are zero

    # Hoisted once (encode() below is traced twice).
    eb1 = bpack_ref[0:1, :]                              # (1, 128)
    ebl = bpack_ref[1:2, :]                              # (1, 128)
    db1 = bpack_ref[2:3, :]                              # (1, 128)
    db2 = db2_ref[...]                                   # (1, 1024)
    id_lane = jax.lax.broadcasted_iota(jnp.int32, (B, L_PAD), 1) < D_LAT

    def encode(x_f32):                                   # (M, 1024) -> (M, 128)
        h = jnp.dot(x_f32.astype(jnp.bfloat16), ew1[...],
                    preferred_element_type=jnp.float32) + eb1
        h = jnp.maximum(h, 0.0)
        return jnp.dot(h.astype(jnp.bfloat16), ewl[...],
                       preferred_element_type=jnp.float32) + ebl

    # 1) Batched encode of [x1 | x2 | x3] (stacked in registers, no host concat).
    x_all = jnp.concatenate([x1_ref[...], x2_ref[...], x3_ref[...]], axis=0)
    z_enc = encode(x_all)                                # (3B, 128) value
    z1 = z_enc[0 * B:1 * B, :]
    z2 = z_enc[1 * B:2 * B, :]
    z3 = z_enc[2 * B:3 * B, :]

    # 2) Four decoder latent inputs built in registers:
    #    rows [z1 | z3 | (z1_id,z2_cov) | (z3_id,z2_cov)]; padded lanes stay zero.
    z_dec = jnp.concatenate(
        [z1, z3, jnp.where(id_lane, z1, z2), jnp.where(id_lane, z3, z2)], axis=0)

    # 3) Batched decode of all 4 latent combos.
    h = jnp.dot(z_dec.astype(jnp.bfloat16), dw1[...],
                preferred_element_type=jnp.float32) + db1
    h = jnp.maximum(h, 0.0)
    w2_cp.wait()                                         # dec_w2 now resident in VMEM
    y = jnp.dot(h.astype(jnp.bfloat16), w2_vmem[...],
                preferred_element_type=jnp.float32) + db2
    x_hat = jax.nn.sigmoid(y)                            # (4B, 1024) value
    xhat_ref[...] = x_hat                                # single lane-dense store

    # 4) Batched re-encode of [x12_hat | x32_hat] straight from the value (no reload).
    z_re = encode(x_hat[2 * B:4 * B, :])                 # (2B, 128)

    # 5) Single merged, lane-dense latent output: rows [z1 | z2 | z3 | z12 | z32].
    zlat_ref[...] = jnp.concatenate([z_enc, z_re], axis=0)


# ---------------------------------------------------------------------------
# Host-side wrapper: mirrors DlrAutoEncoder.forward exactly (14 outputs).
# ---------------------------------------------------------------------------
@jax.jit
def dlr_autoencoder_forward(params, x1, x2, x3):
    x1f = x1.reshape(B, D_IN)
    x2f = x2.reshape(B, D_IN)
    x3f = x3.reshape(B, D_IN)

    xhat, zlat = pl.pallas_call(
        _fused_forward_kernel,
        out_shape=(jax.ShapeDtypeStruct((4 * B, D_IN), jnp.float32),
                   jax.ShapeDtypeStruct((5 * B, L_PAD), jnp.float32)),
        in_specs=[_VMEM, _VMEM, _VMEM,                    # x1, x2, x3
                  _VMEM,                                  # packed bf16 weights
                  pl.BlockSpec(memory_space=pl.ANY),      # dec_w2 (manual overlapped DMA)
                  _VMEM, _VMEM],                          # packed biases, dec_b2
        out_specs=(_VMEM, _VMEM),
        scratch_shapes=[pltpu.VMEM((D_HID, D_IN), jnp.bfloat16),
                        pltpu.SemaphoreType.DMA(())],
    )(x1f, x2f, x3f, params["wpack"], params["dec_w2"],
      params["bpack"], params["dec_b2"])

    def img(rows):
        return rows.reshape(B, C, H, W)

    x1_hat = img(xhat[0 * B:1 * B])
    x3_hat = img(xhat[1 * B:2 * B])
    x12_hat = img(xhat[2 * B:3 * B])
    x32_hat = img(xhat[3 * B:4 * B])

    def heads(rows):
        return rows[:, :D_LAT], rows[:, D_LAT:2 * D_LAT]

    z1_id, z1_cov = heads(zlat[0 * B:1 * B])
    z2_id, z2_cov = heads(zlat[1 * B:2 * B])
    z3_id, z3_cov = heads(zlat[2 * B:3 * B])
    z12_id, z12_cov = heads(zlat[3 * B:4 * B])
    z32_id, z32_cov = heads(zlat[4 * B:5 * B])

    return (x1_hat, x3_hat, x12_hat, x32_hat,
            z1_id, z1_cov, z2_id, z2_cov, z3_id, z3_cov,
            z12_id, z12_cov, z32_id, z32_cov)


# ---------------------------------------------------------------------------
# Deterministic parameter initialization (packed layouts, weights bf16, biases f32).
#   wpack rows : [enc_w1 (1024) | enc_wlat padded (128) | dec_w1 padded (128)]
#   enc_wlat lane layout [w_id | w_cov | zeros] -- keep this packing invariant,
#   the in-kernel id/cov lane mask depends on it.
# ---------------------------------------------------------------------------
def init_params(key):
    ks = jax.random.split(key, 5)

    def lin(k, fan_in, fan_out):
        scale = 1.0 / jnp.sqrt(jnp.float32(fan_in))
        return jax.random.uniform(k, (fan_in, fan_out), jnp.float32, -scale, scale)

    enc_w1 = lin(ks[0], D_IN, D_HID)                                   # (1024, 128)
    w_id = lin(ks[1], D_HID, D_LAT)                                    # (128, 32)
    w_cov = lin(ks[2], D_HID, D_LAT)                                   # (128, 32)
    enc_wlat = jnp.concatenate(
        [w_id, w_cov, jnp.zeros((D_HID, L_PAD - 2 * D_LAT), jnp.float32)], axis=1)
    dec_w1 = lin(ks[3], 2 * D_LAT, D_HID)                              # (64, 128)
    dec_w1_pad = jnp.concatenate(
        [dec_w1, jnp.zeros((L_PAD - 2 * D_LAT, D_HID), jnp.float32)], axis=0)
    dec_w2 = lin(ks[4], D_HID, D_IN)                                   # (128, 1024)

    wpack = jnp.concatenate([enc_w1, enc_wlat, dec_w1_pad], axis=0).astype(jnp.bfloat16)
    assert wpack.shape == (_WPACK_ROWS, D_HID)

    return {
        "wpack": wpack,                                   # (1280, 128) bf16
        "dec_w2": dec_w2.astype(jnp.bfloat16),            # (128, 1024) bf16
        "bpack": jnp.zeros((3, L_PAD), jnp.float32),      # rows: enc_b1, enc_blat, dec_b1
        "dec_b2": jnp.zeros((1, D_IN), jnp.float32),
    }


# ---------------------------------------------------------------------------
# Main
# ---------------------------------------------------------------------------
if __name__ == "__main__":
    root = jax.random.PRNGKey(0)
    k_params, k1, k2, k3 = jax.random.split(root, 4)

    params = init_params(k_params)
    x1 = jax.random.normal(k1, (B, C, H, W), jnp.float32)
    x2 = jax.random.normal(k2, (B, C, H, W), jnp.float32)
    x3 = jax.random.normal(k3, (B, C, H, W), jnp.float32)

    outs = dlr_autoencoder_forward(params, x1, x2, x3)
    outs = jax.block_until_ready(outs)

    assert len(outs) == 14
    for o in outs[:4]:
        assert o.shape == (B, C, H, W) and o.dtype == jnp.float32
    for o in outs[4:]:
        assert o.shape == (B, D_LAT) and o.dtype == jnp.float32
    assert all(bool(jnp.all(jnp.isfinite(o))) for o in outs)

    print("KERNEL_OK")
</pallas_src>

<mosaic_0001>
module attributes {stable_mosaic.version = 11 : i64} {
  func.func @_fused_forward_kernel(%arg0: memref<2x1024xf32, #tpu.memory_space<vmem>>, %arg1: memref<2x1024xf32, #tpu.memory_space<vmem>>, %arg2: memref<2x1024xf32, #tpu.memory_space<vmem>>, %arg3: memref<1280x128xbf16, #tpu.memory_space<vmem>>, %arg4: memref<128x1024xbf16, #tpu.memory_space<any>>, %arg5: memref<3x128xf32, #tpu.memory_space<vmem>>, %arg6: memref<1x1024xf32, #tpu.memory_space<vmem>>, %arg7: memref<8x1024xf32, #tpu.memory_space<vmem>>, %arg8: memref<10x128xf32, #tpu.memory_space<vmem>>, %arg9: memref<128x1024xbf16, #tpu.memory_space<vmem>>, %arg10: memref<!tpu.dma_semaphore, #tpu.memory_space<semaphore_mem>>) attributes {dimension_semantics = [], scalar_prefetch = 0 : i64, scratch_operands = 2 : i64, tpu.core_type = #tpu.core_type<tc>} {
    tpu.enqueue_dma source(%arg4 : memref<128x1024xbf16, #tpu.memory_space<any>>) target(%arg9 : memref<128x1024xbf16, #tpu.memory_space<vmem>>) target_semaphore(%arg10 : memref<!tpu.dma_semaphore, #tpu.memory_space<semaphore_mem>>)
    %c0 = arith.constant 0 : index
    %c0_0 = arith.constant 0 : index
    %0 = vector.load %arg5[%c0, %c0_0] : memref<3x128xf32, #tpu.memory_space<vmem>>, vector<1x128xf32>
    %c1 = arith.constant 1 : index
    %c0_1 = arith.constant 0 : index
    %1 = vector.load %arg5[%c1, %c0_1] : memref<3x128xf32, #tpu.memory_space<vmem>>, vector<1x128xf32>
    %c2 = arith.constant 2 : index
    %c0_2 = arith.constant 0 : index
    %2 = vector.load %arg5[%c2, %c0_2] : memref<3x128xf32, #tpu.memory_space<vmem>>, vector<1x128xf32>
    %c0_3 = arith.constant 0 : index
    %c0_4 = arith.constant 0 : index
    %3 = vector.load %arg6[%c0_3, %c0_4] : memref<1x1024xf32, #tpu.memory_space<vmem>>, vector<1x1024xf32>
    %4 = tpu.iota {dimensions = array<i32: 1>} : vector<2x128xi32>
    %c32_i32 = arith.constant 32 : i32
    %5 = vector.broadcast %c32_i32 : i32 to vector<2x128xi32>
    %6 = arith.cmpi slt, %4, %5 : vector<2x128xi32>
    %c0_5 = arith.constant 0 : index
    %c0_6 = arith.constant 0 : index
    %7 = vector.load %arg0[%c0_5, %c0_6] : memref<2x1024xf32, #tpu.memory_space<vmem>>, vector<2x1024xf32>
    %c0_7 = arith.constant 0 : index
    %c0_8 = arith.constant 0 : index
    %8 = vector.load %arg1[%c0_7, %c0_8] : memref<2x1024xf32, #tpu.memory_space<vmem>>, vector<2x1024xf32>
    %c0_9 = arith.constant 0 : index
    %c0_10 = arith.constant 0 : index
    %9 = vector.load %arg2[%c0_9, %c0_10] : memref<2x1024xf32, #tpu.memory_space<vmem>>, vector<2x1024xf32>
    %10 = tpu.concatenate %7, %8, %9 in 0 : vector<2x1024xf32>, vector<2x1024xf32>, vector<2x1024xf32> -> vector<6x1024xf32>
    %11 = arith.truncf %10 : vector<6x1024xf32> to vector<6x1024xbf16>
    %c0_11 = arith.constant 0 : index
    %c0_12 = arith.constant 0 : index
    %12 = vector.load %arg3[%c0_11, %c0_12] : memref<1280x128xbf16, #tpu.memory_space<vmem>>, vector<1024x128xbf16>
    %cst = arith.constant dense<0.000000e+00> : vector<6x128xf32>
    %13 = tpu.matmul %11, %12, %cst {dimension_numbers = #tpu.dot_dimension_numbers<[1], [0], [0], [1], [0, 0, 1, 1], [], []>} : vector<6x1024xbf16>, vector<1024x128xbf16>, vector<6x128xf32> -> vector<6x128xf32>
    %14 = vector.broadcast %0 : vector<1x128xf32> to vector<6x128xf32>
    %15 = arith.addf %13, %14 : vector<6x128xf32>
    %cst_13 = arith.constant 0.000000e+00 : f32
    %16 = vector.broadcast %cst_13 : f32 to vector<6x128xf32>
    %17 = arith.maximumf %15, %16 : vector<6x128xf32>
    %18 = arith.truncf %17 : vector<6x128xf32> to vector<6x128xbf16>
    %c1024 = arith.constant 1024 : index
    %c0_14 = arith.constant 0 : index
    %19 = vector.load %arg3[%c1024, %c0_14] : memref<1280x128xbf16, #tpu.memory_space<vmem>>, vector<128x128xbf16>
    %cst_15 = arith.constant dense<0.000000e+00> : vector<6x128xf32>
    %20 = tpu.matmul %18, %19, %cst_15 {dimension_numbers = #tpu.dot_dimension_numbers<[1], [0], [0], [1], [0, 0, 1, 1], [], []>} : vector<6x128xbf16>, vector<128x128xbf16>, vector<6x128xf32> -> vector<6x128xf32>
    %21 = vector.broadcast %1 : vector<1x128xf32> to vector<6x128xf32>
    %22 = arith.addf %20, %21 : vector<6x128xf32>
    %23 = vector.extract_strided_slice %22 {offsets = [0, 0], sizes = [2, 128], strides = [1, 1]} : vector<6x128xf32> to vector<2x128xf32>
    %24 = vector.extract_strided_slice %22 {offsets = [2, 0], sizes = [2, 128], strides = [1, 1]} : vector<6x128xf32> to vector<2x128xf32>
    %25 = vector.extract_strided_slice %22 {offsets = [4, 0], sizes = [2, 128], strides = [1, 1]} : vector<6x128xf32> to vector<2x128xf32>
    %26 = arith.select %6, %23, %24 : vector<2x128xi1>, vector<2x128xf32>
    %27 = arith.select %6, %25, %24 : vector<2x128xi1>, vector<2x128xf32>
    %28 = tpu.concatenate %23, %25, %26, %27 in 0 : vector<2x128xf32>, vector<2x128xf32>, vector<2x128xf32>, vector<2x128xf32> -> vector<8x128xf32>
    %29 = arith.truncf %28 : vector<8x128xf32> to vector<8x128xbf16>
    %c1152 = arith.constant 1152 : index
    %c0_16 = arith.constant 0 : index
    %30 = vector.load %arg3[%c1152, %c0_16] : memref<1280x128xbf16, #tpu.memory_space<vmem>>, vector<128x128xbf16>
    %cst_17 = arith.constant dense<0.000000e+00> : vector<8x128xf32>
    %31 = tpu.matmul %29, %30, %cst_17 {dimension_numbers = #tpu.dot_dimension_numbers<[1], [0], [0], [1], [0, 0, 1, 1], [], []>} : vector<8x128xbf16>, vector<128x128xbf16>, vector<8x128xf32> -> vector<8x128xf32>
    %32 = vector.broadcast %2 : vector<1x128xf32> to vector<8x128xf32>
    %33 = arith.addf %31, %32 : vector<8x128xf32>
    %cst_18 = arith.constant 0.000000e+00 : f32
    %34 = vector.broadcast %cst_18 : f32 to vector<8x128xf32>
    %35 = arith.maximumf %33, %34 : vector<8x128xf32>
    tpu.wait_dma2 semaphore(%arg10 : memref<!tpu.dma_semaphore, #tpu.memory_space<semaphore_mem>>) src(%arg4 : memref<128x1024xbf16, #tpu.memory_space<any>>) dst(%arg9 : memref<128x1024xbf16, #tpu.memory_space<vmem>>)
    %36 = arith.truncf %35 : vector<8x128xf32> to vector<8x128xbf16>
    %c0_19 = arith.constant 0 : index
    %c0_20 = arith.constant 0 : index
    %37 = vector.load %arg9[%c0_19, %c0_20] : memref<128x1024xbf16, #tpu.memory_space<vmem>>, vector<128x1024xbf16>
    %cst_21 = arith.constant dense<0.000000e+00> : vector<8x1024xf32>
    %38 = tpu.matmul %36, %37, %cst_21 {dimension_numbers = #tpu.dot_dimension_numbers<[1], [0], [0], [1], [0, 0, 1, 1], [], []>} : vector<8x128xbf16>, vector<128x1024xbf16>, vector<8x1024xf32> -> vector<8x1024xf32>
    %39 = vector.broadcast %3 : vector<1x1024xf32> to vector<8x1024xf32>
    %40 = arith.addf %38, %39 : vector<8x1024xf32>
    %41 = arith.negf %40 : vector<8x1024xf32>
    %42 = math.exp %41 : vector<8x1024xf32>
    %cst_22 = arith.constant 1.000000e+00 : f32
    %43 = vector.broadcast %cst_22 : f32 to vector<8x1024xf32>
    %44 = arith.addf %43, %42 : vector<8x1024xf32>
    %45 = arith.divf %43, %44 : vector<8x1024xf32>
    %c0_23 = arith.constant 0 : index
    %c0_24 = arith.constant 0 : index
    %46 = vector.load %arg7[%c0_23, %c0_24] : memref<8x1024xf32, #tpu.memory_space<vmem>>, vector<8x1024xf32>
    tpu.vector_store %arg7[%c0_23, %c0_24], %45 {strides = array<i32>} : memref<8x1024xf32, #tpu.memory_space<vmem>>, vector<8x1024xf32>,
    %47 = vector.extract_strided_slice %45 {offsets = [4, 0], sizes = [4, 1024], strides = [1, 1]} : vector<8x1024xf32> to vector<4x1024xf32>
    %48 = arith.truncf %47 : vector<4x1024xf32> to vector<4x1024xbf16>
    %c0_25 = arith.constant 0 : index
    %c0_26 = arith.constant 0 : index
    %49 = vector.load %arg3[%c0_25, %c0_26] : memref<1280x128xbf16, #tpu.memory_space<vmem>>, vector<1024x128xbf16>
    %cst_27 = arith.constant dense<0.000000e+00> : vector<4x128xf32>
    %50 = tpu.matmul %48, %49, %cst_27 {dimension_numbers = #tpu.dot_dimension_numbers<[1], [0], [0], [1], [0, 0, 1, 1], [], []>} : vector<4x1024xbf16>, vector<1024x128xbf16>, vector<4x128xf32> -> vector<4x128xf32>
    %51 = vector.broadcast %0 : vector<1x128xf32> to vector<4x128xf32>
    %52 = arith.addf %50, %51 : vector<4x128xf32>
    %cst_28 = arith.constant 0.000000e+00 : f32
    %53 = vector.broadcast %cst_28 : f32 to vector<4x128xf32>
    %54 = arith.maximumf %52, %53 : vector<4x128xf32>
    %55 = arith.truncf %54 : vector<4x128xf32> to vector<4x128xbf16>
    %c1024_29 = arith.constant 1024 : index
    %c0_30 = arith.constant 0 : index
    %56 = vector.load %arg3[%c1024_29, %c0_30] : memref<1280x128xbf16, #tpu.memory_space<vmem>>, vector<128x128xbf16>
    %cst_31 = arith.constant dense<0.000000e+00> : vector<4x128xf32>
    %57 = tpu.matmul %55, %56, %cst_31 {dimension_numbers = #tpu.dot_dimension_numbers<[1], [0], [0], [1], [0, 0, 1, 1], [], []>} : vector<4x128xbf16>, vector<128x128xbf16>, vector<4x128xf32> -> vector<4x128xf32>
    %58 = vector.broadcast %1 : vector<1x128xf32> to vector<4x128xf32>
    %59 = arith.addf %57, %58 : vector<4x128xf32>
    %60 = tpu.concatenate %22, %59 in 0 : vector<6x128xf32>, vector<4x128xf32> -> vector<10x128xf32>
    %c0_32 = arith.constant 0 : index
    %c0_33 = arith.constant 0 : index
    %61 = vector.load %arg8[%c0_32, %c0_33] : memref<10x128xf32, #tpu.memory_space<vmem>>, vector<10x128xf32>
    tpu.vector_store %arg8[%c0_32, %c0_33], %60 {strides = array<i32>} : memref<10x128xf32, #tpu.memory_space<vmem>>, vector<10x128xf32>,
    return
  }
}

</mosaic_0001>

<llo_original>
// kernel: dlr_autoencoder_forward.1
$region0: #{dlr_autoencoder_forward.1}
  #allocation0 [shape = 'u32[]', space=smem, size = 0x4, offset = 0x4, fixed_abs, tag = 'smem constant byte address 0x4 - core index']
  #allocation1 [shape = 'u32[144,128]{1,0:T(1,128)}', space=vmem, size = 0x12000, scoped, tag = 'internal scratch']
  #allocation2 [shape = 'bf16[128,1024]{1,0:T(16,128)(2,1)}', space=vmem, size = 0x40000, scoped, tag = 'scratch operand']
  #allocation3 [shape = 's32[1]{0}', space=sflag, size = 0x4, scoped, tag = 'scratch operand']
  #allocation6 [shape = 's32[]', space=sflag, size = 0x4, offset = 0, fixed_abs, tag = 'sflag constant byte address 0x0 - dummy sync flag']
  %s0 = inlined_call_operand.vmem [shape: f32[2,1024], index: 0, kind: input, shape index: {}]
  %s1 = inlined_call_operand.vmem [shape: f32[2,1024], index: 1, kind: input, shape index: {}]
  %s2 = inlined_call_operand.vmem [shape: f32[2,1024], index: 2, kind: input, shape index: {}]
  %s3 = inlined_call_operand.hbm [shape: bf16[1280,128], index: 3, kind: input, shape index: {}]
  %s4 = inlined_call_operand.hbm [shape: bf16[128,1024], index: 4, kind: input, shape index: {}]
  %s5 = inlined_call_operand.vmem [shape: f32[3,128], index: 5, kind: input, shape index: {}]
  %s6 = inlined_call_operand.vmem [shape: f32[1,1024], index: 6, kind: input, shape index: {}]
  %s7 = inlined_call_operand.vmem [shape: f32[8,1024], index: 7, kind: output, shape index: {0}]
  %s8 = inlined_call_operand.vmem [shape: f32[10,128], index: 8, kind: output, shape index: {1}]
  %9 = xla_tuple %s7, %s8
  %s10 = sld [smem:[#allocation0]]
  $region46: #{dlr_autoencoder_forward.1} parent=0
    _
  %s12 = ssub.s32 1, %s10
  %s13 = scalar_select 0, %s12, %s10
  $region1: #{dlr_autoencoder_forward.1} parent=0
    #allocation4 [shape = 'u8[327680]{0}', space=vmem, size = 0x50000, scoped, tag = 'input window, operand 3, single buffered']
    #allocation5 [shape = 's32[1]{0}', space=sflag, size = 0x4, scoped, tag = 'scoped memory for dlr_autoencoder_forward.1']
    #allocation7 [shape = 'u32[9]{0}', space=smem, size = 0x24, scoped, tag = 'DMA stride descriptor']
    %14 = vsyncpa [#allocation5], 0
    // Predicated region
    $region2: #{dlr_autoencoder_forward.1} parent=1 // pred_check
      _
    $region3: #{dlr_autoencoder_forward.1} parent=1 // pred_check_branch
      %16 = sbr.rel (0) target = $region5
    $region4: #{dlr_autoencoder_forward.1} parent=1 // pred_region
      _
    $region5: #{dlr_autoencoder_forward.1} parent=1 // pred_fallthru
      _
    // Predicated region
    $region6: #{dlr_autoencoder_forward.1} parent=1 // pred_check
      _
    $region7: #{dlr_autoencoder_forward.1} parent=1 // pred_check_branch
      %18 = sbr.rel (0) target = $region9
    $region8: #{dlr_autoencoder_forward.1} parent=1 // pred_region
      _
    $region9: #{dlr_autoencoder_forward.1} parent=1 // pred_fallthru
      _
    // Predicated region
    $region10: #{dlr_autoencoder_forward.1} parent=1 // pred_check
      _
    $region11: #{dlr_autoencoder_forward.1} parent=1 // pred_check_branch
      %20 = sbr.rel (0) target = $region13
    $region12: #{dlr_autoencoder_forward.1} parent=1 // pred_region
      _
    $region13: #{dlr_autoencoder_forward.1} parent=1 // pred_fallthru
      _
    // Predicated region
    $region14: #{dlr_autoencoder_forward.1} parent=1 // pred_check
      _
    $region15: #{dlr_autoencoder_forward.1} parent=1 // pred_check_branch
      %22 = sbr.rel (0) target = $region17
    $region16: #{dlr_autoencoder_forward.1} parent=1 // pred_region
      %s24 = ssub.s32 10240, 10240
      %25 = vsyncadd [#allocation5], %s24
      %s26 = sshll.u32 [#allocation4], 4
      %s27 = int_to_ptr.vmem [resolvable:$true] %s26
      %32 = dma.hbm_to_vmem [thread:$0]  %s3, 10240, %s27, [#allocation5], 64, 64, 4
    $region17: #{dlr_autoencoder_forward.1} parent=1 // pred_fallthru
      _
    // Predicated region
    $region18: #{dlr_autoencoder_forward.1} parent=1 // pred_check
      _
    $region19: #{dlr_autoencoder_forward.1} parent=1 // pred_check_branch
      %34 = sbr.rel (0) target = $region21
    $region20: #{dlr_autoencoder_forward.1} parent=1 // pred_region
      _
    $region21: #{dlr_autoencoder_forward.1} parent=1 // pred_fallthru
      _
    // Predicated region
    $region22: #{dlr_autoencoder_forward.1} parent=1 // pred_check
      _
    $region23: #{dlr_autoencoder_forward.1} parent=1 // pred_check_branch
      %36 = sbr.rel (0) target = $region25
    $region24: #{dlr_autoencoder_forward.1} parent=1 // pred_region
      _
    $region25: #{dlr_autoencoder_forward.1} parent=1 // pred_fallthru
      _
    // Predicated region
    $region26: #{dlr_autoencoder_forward.1} parent=1 // pred_check
      _
    $region27: #{dlr_autoencoder_forward.1} parent=1 // pred_check_branch
      %38 = sbr.rel (0) target = $region29
    $region28: #{dlr_autoencoder_forward.1} parent=1 // pred_region
      %39 = dma.done [#allocation5], 10240
    $region29: #{dlr_autoencoder_forward.1} parent=1 // pred_fallthru
      _
    %s42 = sshll.u32 1, 14
    %s43 = sxor.u32 4294967295, %s42
    %s45 = sld [smem:[#allocation0]]
    %s46 = sadd.s32 2, %s45
    %s48 = sshll.u32 7, 26
    %s49 = sxor.u32 4294967295, %s48
    %s50 = sand.u32 0, %s49
    %s51 = sshll.u32 %s46, 26
    %s52 = sor.u32 %s50, %s51
    %s53 = sshll.u32 [#allocation2], 4
    %s54 = int_to_ptr.vmem [resolvable:$true] %s53
    %57 = sst [smem:[#allocation7]] 1024
    %s58 = scalar_lea.smem [#allocation7], 1
    %59 = sst [smem:[%s58]] 1024
    %s60 = scalar_lea.smem [#allocation7], 2
    %61 = sst [smem:[%s60]] 8
    %s62 = scalar_lea.smem [#allocation7], 3
    %63 = sst [smem:[%s62]] 64
    %s64 = scalar_lea.smem [#allocation7], 4
    %65 = sst [smem:[%s64]] 128
    %s66 = scalar_lea.smem [#allocation7], 5
    %67 = sst [smem:[%s66]] 2
    %s68 = scalar_lea.smem [#allocation7], 6
    %69 = sst [smem:[%s68]] 512
    %s70 = scalar_lea.smem [#allocation7], 7
    %71 = sst [smem:[%s70]] 64
    %s72 = scalar_lea.smem [#allocation7], 8
    %73 = sst [smem:[%s72]] 4
    %75 = dma.general %s4, 8192, %s54, [#allocation3], [#allocation6], [#allocation7], %s52, 0
    %v76 = vld [vmem:[%s5] sm:$0x1]
    %v77 = vld [vmem:[%s5 + $0x1] sm:$0x1]
    %v78 = vld [vmem:[%s5 + $0x2] sm:$0x1]
    %v79 = vld [vmem:[%s6] sm:$0xff]
    %v80 = vlaneseq
    %v81 = vand.u32 %v80, 127
    %vm82 = vcmp.lt.s32.totalorder %v81, 32
    %v83 = vld [vmem:[%s0] sm:$0xff]
    %v84 = vld [vmem:[%s0 + $0x8] sm:$0xff]
    %v85 = vld [vmem:[%s1] sm:$0xff]
    %v86 = vld [vmem:[%s1 + $0x8] sm:$0xff]
    %v87 = vld [vmem:[%s2] sm:$0xff]
    %v88 = vld [vmem:[%s2 + $0x8] sm:$0xff]
    %v91 = vcombine.high %v83, %v83
    %v93 = vunpack.c.l.s4 1983009808
    %v94 = vunpack.c.0.s8 %v93
    %v95 = vlaneseq
    %v96 = vshrl.u32 %v95, 7
    %v97 = vsub.s32 %v94, %v96
    %v98 = vrot.slane %v83, %v97
    %v100 = vunpack.c.l.s4 1983009808
    %v101 = vunpack.c.0.s8 %v100
    %v102 = vlaneseq
    %v103 = vshrl.u32 %v102, 7
    %v104 = vsub.s32 %v101, %v103
    %v105 = vrot.slane %v91, %v104
    %v106 = vcombine.high %v98, %v98
    %v107 = vcombine.high %v105, %v105
    %v108 = vcombine.high %v84, %v84
    %v110 = vunpack.c.l.s4 1983009808
    %v111 = vunpack.c.0.s8 %v110
    %v112 = vlaneseq
    %v113 = vshrl.u32 %v112, 7
    %v114 = vsub.s32 %v111, %v113
    %v115 = vrot.slane %v84, %v114
    %v117 = vunpack.c.l.s4 1983009808
    %v118 = vunpack.c.0.s8 %v117
    %v119 = vlaneseq
    %v120 = vshrl.u32 %v119, 7
    %v121 = vsub.s32 %v118, %v120
    %v122 = vrot.slane %v108, %v121
    %v123 = vcombine.high %v115, %v115
    %v124 = vcombine.high %v122, %v122
    %v135 = vcombine.low %v85, %v85
    %v137 = vunpack.c.l.s4 1983009808
    %v138 = vunpack.c.0.s8 %v137
    %v139 = vlaneseq
    %v140 = vshrl.u32 %v139, 7
    %v141 = vsub.s32 %v138, %v140
    %v142 = vrot.slane %v135, %v141
    %v144 = vunpack.c.l.s4 1983009808
    %v145 = vunpack.c.0.s8 %v144
    %v146 = vlaneseq
    %v147 = vshrl.u32 %v146, 7
    %v148 = vsub.s32 %v145, %v147
    %v149 = vrot.slane %v85, %v148
    %v150 = vcombine.high %v142, %v142
    %v151 = vcombine.high %v149, %v149
    %v152 = vcombine.low %v86, %v86
    %v154 = vunpack.c.l.s4 1983009808
    %v155 = vunpack.c.0.s8 %v154
    %v156 = vlaneseq
    %v157 = vshrl.u32 %v156, 7
    %v158 = vsub.s32 %v155, %v157
    %v159 = vrot.slane %v152, %v158
    %v161 = vunpack.c.l.s4 1983009808
    %v162 = vunpack.c.0.s8 %v161
    %v163 = vlaneseq
    %v164 = vshrl.u32 %v163, 7
    %v165 = vsub.s32 %v162, %v164
    %v166 = vrot.slane %v86, %v165
    %v167 = vcombine.high %v159, %v159
    %v168 = vcombine.high %v166, %v166
    %v179 = vcombine.high %v87, %v87
    %v181 = vunpack.c.l.s4 1983009808
    %v182 = vunpack.c.0.s8 %v181
    %v183 = vlaneseq
    %v184 = vshrl.u32 %v183, 7
    %v185 = vsub.s32 %v182, %v184
    %v186 = vrot.slane %v87, %v185
    %v188 = vunpack.c.l.s4 1983009808
    %v189 = vunpack.c.0.s8 %v188
    %v190 = vlaneseq
    %v191 = vshrl.u32 %v190, 7
    %v192 = vsub.s32 %v189, %v191
    %v193 = vrot.slane %v179, %v192
    %v194 = vcombine.low %v186, %v186
    %v195 = vcombine.low %v193, %v193
    %v196 = vcombine.high %v88, %v88
    %v198 = vunpack.c.l.s4 1983009808
    %v199 = vunpack.c.0.s8 %v198
    %v200 = vlaneseq
    %v201 = vshrl.u32 %v200, 7
    %v202 = vsub.s32 %v199, %v201
    %v203 = vrot.slane %v88, %v202
    %v205 = vunpack.c.l.s4 1983009808
    %v206 = vunpack.c.0.s8 %v205
    %v207 = vlaneseq
    %v208 = vshrl.u32 %v207, 7
    %v209 = vsub.s32 %v206, %v208
    %v210 = vrot.slane %v196, %v209
    %v211 = vcombine.low %v203, %v203
    %v212 = vcombine.low %v210, %v210
    %vm221 = vcmask 1041408
    %v222 = vsel %vm221, %v98, %v142
    %v223 = vsel %vm221, %v106, %v150
    %v224 = vsel %vm221, %v105, %v149
    %v225 = vsel %vm221, %v107, %v151
    %v226 = vsel %vm221, %v115, %v159
    %v227 = vsel %vm221, %v123, %v167
    %v228 = vsel %vm221, %v122, %v166
    %v229 = vsel %vm221, %v124, %v168
    %vm230 = vcmask 1043456
    %v231 = vsel %vm230, %v222, %v194
    %v232 = vsel %vm230, %v223, %v186
    %v233 = vsel %vm230, %v224, %v195
    %v234 = vsel %vm230, %v225, %v193
    %v235 = vsel %vm230, %v226, %v211
    %v236 = vsel %vm230, %v227, %v203
    %v237 = vsel %vm230, %v228, %v212
    %v238 = vsel %vm230, %v229, %v210
    %v239 = vpack.c.bf16 %v231, %v231
    %v240 = vpack.c.bf16 %v232, %v232
    %v241 = vpack.c.bf16 %v233, %v233
    %v242 = vpack.c.bf16 %v234, %v234
    %v243 = vpack.c.bf16 %v235, %v235
    %v244 = vpack.c.bf16 %v236, %v236
    %v245 = vpack.c.bf16 %v237, %v237
    %v246 = vpack.c.bf16 %v238, %v238
    %v247 = vld [vmem:[#allocation4] sm:$0xf]
    %v248 = vld [vmem:[#allocation4 + $0x4] sm:$0xf]
    %v249 = vld [vmem:[#allocation4 + $0x8] sm:$0xf]
    %v250 = vld [vmem:[#allocation4 + $0xc] sm:$0xf]
    %v251 = vld [vmem:[#allocation4 + $0x10] sm:$0xf]
    %v252 = vld [vmem:[#allocation4 + $0x14] sm:$0xf]
    %v253 = vld [vmem:[#allocation4 + $0x18] sm:$0xf]
    %v254 = vld [vmem:[#allocation4 + $0x1c] sm:$0xf]
    %v255 = vld [vmem:[#allocation4 + $0x20] sm:$0xf]
    %v256 = vld [vmem:[#allocation4 + $0x24] sm:$0xf]
    %v257 = vld [vmem:[#allocation4 + $0x28] sm:$0xf]
    %v258 = vld [vmem:[#allocation4 + $0x2c] sm:$0xf]
    %v259 = vld [vmem:[#allocation4 + $0x30] sm:$0xf]
    %v260 = vld [vmem:[#allocation4 + $0x34] sm:$0xf]
    %v261 = vld [vmem:[#allocation4 + $0x38] sm:$0xf]
    %v262 = vld [vmem:[#allocation4 + $0x3c] sm:$0xf]
    %v263 = vld [vmem:[#allocation4 + $0x40] sm:$0xf]
    %v264 = vld [vmem:[#allocation4 + $0x44] sm:$0xf]
    %v265 = vld [vmem:[#allocation4 + $0x48] sm:$0xf]
    %v266 = vld [vmem:[#allocation4 + $0x4c] sm:$0xf]
    %v267 = vld [vmem:[#allocation4 + $0x50] sm:$0xf]
    %v268 = vld [vmem:[#allocation4 + $0x54] sm:$0xf]
    %v269 = vld [vmem:[#allocation4 + $0x58] sm:$0xf]
    %v270 = vld [vmem:[#allocation4 + $0x5c] sm:$0xf]
    %v271 = vld [vmem:[#allocation4 + $0x60] sm:$0xf]
    %v272 = vld [vmem:[#allocation4 + $0x64] sm:$0xf]
    %v273 = vld [vmem:[#allocation4 + $0x68] sm:$0xf]
    %v274 = vld [vmem:[#allocation4 + $0x6c] sm:$0xf]
    %v275 = vld [vmem:[#allocation4 + $0x70] sm:$0xf]
    %v276 = vld [vmem:[#allocation4 + $0x74] sm:$0xf]
    %v277 = vld [vmem:[#allocation4 + $0x78] sm:$0xf]
    %v278 = vld [vmem:[#allocation4 + $0x7c] sm:$0xf]
    %v279 = vld [vmem:[#allocation4 + $0x80] sm:$0xf]
    %v280 = vld [vmem:[#allocation4 + $0x84] sm:$0xf]
    %v281 = vld [vmem:[#allocation4 + $0x88] sm:$0xf]
    %v282 = vld [vmem:[#allocation4 + $0x8c] sm:$0xf]
    %v283 = vld [vmem:[#allocation4 + $0x90] sm:$0xf]
    %v284 = vld [vmem:[#allocation4 + $0x94] sm:$0xf]
    %v285 = vld [vmem:[#allocation4 + $0x98] sm:$0xf]
    %v286 = vld [vmem:[#allocation4 + $0x9c] sm:$0xf]
    %v287 = vld [vmem:[#allocation4 + $0xa0] sm:$0xf]
    %v288 = vld [vmem:[#allocation4 + $0xa4] sm:$0xf]
    %v289 = vld [vmem:[#allocation4 + $0xa8] sm:$0xf]
    %v290 = vld [vmem:[#allocation4 + $0xac] sm:$0xf]
    %v291 = vld [vmem:[#allocation4 + $0xb0] sm:$0xf]
    %v292 = vld [vmem:[#allocation4 + $0xb4] sm:$0xf]
    %v293 = vld [vmem:[#allocation4 + $0xb8] sm:$0xf]
    %v294 = vld [vmem:[#allocation4 + $0xbc] sm:$0xf]
    %v295 = vld [vmem:[#allocation4 + $0xc0] sm:$0xf]
    %v296 = vld [vmem:[#allocation4 + $0xc4] sm:$0xf]
    %v297 = vld [vmem:[#allocation4 + $0xc8] sm:$0xf]
    %v298 = vld [vmem:[#allocation4 + $0xcc] sm:$0xf]
    %v299 = vld [vmem:[#allocation4 + $0xd0] sm:$0xf]
    %v300 = vld [vmem:[#allocation4 + $0xd4] sm:$0xf]
    %v301 = vld [vmem:[#allocation4 + $0xd8] sm:$0xf]
    %v302 = vld [vmem:[#allocation4 + $0xdc] sm:$0xf]
    %v303 = vld [vmem:[#allocation4 + $0xe0] sm:$0xf]
    %v304 = vld [vmem:[#allocation4 + $0xe4] sm:$0xf]
    %v305 = vld [vmem:[#allocation4 + $0xe8] sm:$0xf]
    %v306 = vld [vmem:[#allocation4 + $0xec] sm:$0xf]
    %v307 = vld [vmem:[#allocation4 + $0xf0] sm:$0xf]
    %v308 = vld [vmem:[#allocation4 + $0xf4] sm:$0xf]
    %v309 = vld [vmem:[#allocation4 + $0xf8] sm:$0xf]
    %v310 = vld [vmem:[#allocation4 + $0xfc] sm:$0xf]
    %v311 = vld [vmem:[#allocation4 + $0x100] sm:$0xf]
    %v312 = vld [vmem:[#allocation4 + $0x104] sm:$0xf]
    %v313 = vld [vmem:[#allocation4 + $0x108] sm:$0xf]
    %v314 = vld [vmem:[#allocation4 + $0x10c] sm:$0xf]
    %v315 = vld [vmem:[#allocation4 + $0x110] sm:$0xf]
    %v316 = vld [vmem:[#allocation4 + $0x114] sm:$0xf]
    %v317 = vld [vmem:[#allocation4 + $0x118] sm:$0xf]
    %v318 = vld [vmem:[#allocation4 + $0x11c] sm:$0xf]
    %v319 = vld [vmem:[#allocation4 + $0x120] sm:$0xf]
    %v320 = vld [vmem:[#allocation4 + $0x124] sm:$0xf]
    %v321 = vld [vmem:[#allocation4 + $0x128] sm:$0xf]
    %v322 = vld [vmem:[#allocation4 + $0x12c] sm:$0xf]
    %v323 = vld [vmem:[#allocation4 + $0x130] sm:$0xf]
    %v324 = vld [vmem:[#allocation4 + $0x134] sm:$0xf]
    %v325 = vld [vmem:[#allocation4 + $0x138] sm:$0xf]
    %v326 = vld [vmem:[#allocation4 + $0x13c] sm:$0xf]
    %v327 = vld [vmem:[#allocation4 + $0x140] sm:$0xf]
    %v328 = vld [vmem:[#allocation4 + $0x144] sm:$0xf]
    %v329 = vld [vmem:[#allocation4 + $0x148] sm:$0xf]
    %v330 = vld [vmem:[#allocation4 + $0x14c] sm:$0xf]
    %v331 = vld [vmem:[#allocation4 + $0x150] sm:$0xf]
    %v332 = vld [vmem:[#allocation4 + $0x154] sm:$0xf]
    %v333 = vld [vmem:[#allocation4 + $0x158] sm:$0xf]
    %v334 = vld [vmem:[#allocation4 + $0x15c] sm:$0xf]
    %v335 = vld [vmem:[#allocation4 + $0x160] sm:$0xf]
    %v336 = vld [vmem:[#allocation4 + $0x164] sm:$0xf]
    %v337 = vld [vmem:[#allocation4 + $0x168] sm:$0xf]
    %v338 = vld [vmem:[#allocation4 + $0x16c] sm:$0xf]
    %v339 = vld [vmem:[#allocation4 + $0x170] sm:$0xf]
    %v340 = vld [vmem:[#allocation4 + $0x174] sm:$0xf]
    %v341 = vld [vmem:[#allocation4 + $0x178] sm:$0xf]
    %v342 = vld [vmem:[#allocation4 + $0x17c] sm:$0xf]
    %v343 = vld [vmem:[#allocation4 + $0x180] sm:$0xf]
    %v344 = vld [vmem:[#allocation4 + $0x184] sm:$0xf]
    %v345 = vld [vmem:[#allocation4 + $0x188] sm:$0xf]
    %v346 = vld [vmem:[#allocation4 + $0x18c] sm:$0xf]
    %v347 = vld [vmem:[#allocation4 + $0x190] sm:$0xf]
    %v348 = vld [vmem:[#allocation4 + $0x194] sm:$0xf]
    %v349 = vld [vmem:[#allocation4 + $0x198] sm:$0xf]
    %v350 = vld [vmem:[#allocation4 + $0x19c] sm:$0xf]
    %v351 = vld [vmem:[#allocation4 + $0x1a0] sm:$0xf]
    %v352 = vld [vmem:[#allocation4 + $0x1a4] sm:$0xf]
    %v353 = vld [vmem:[#allocation4 + $0x1a8] sm:$0xf]
    %v354 = vld [vmem:[#allocation4 + $0x1ac] sm:$0xf]
    %v355 = vld [vmem:[#allocation4 + $0x1b0] sm:$0xf]
    %v356 = vld [vmem:[#allocation4 + $0x1b4] sm:$0xf]
    %v357 = vld [vmem:[#allocation4 + $0x1b8] sm:$0xf]
    %v358 = vld [vmem:[#allocation4 + $0x1bc] sm:$0xf]
    %v359 = vld [vmem:[#allocation4 + $0x1c0] sm:$0xf]
    %v360 = vld [vmem:[#allocation4 + $0x1c4] sm:$0xf]
    %v361 = vld [vmem:[#allocation4 + $0x1c8] sm:$0xf]
    %v362 = vld [vmem:[#allocation4 + $0x1cc] sm:$0xf]
    %v363 = vld [vmem:[#allocation4 + $0x1d0] sm:$0xf]
    %v364 = vld [vmem:[#allocation4 + $0x1d4] sm:$0xf]
    %v365 = vld [vmem:[#allocation4 + $0x1d8] sm:$0xf]
    %v366 = vld [vmem:[#allocation4 + $0x1dc] sm:$0xf]
    %v367 = vld [vmem:[#allocation4 + $0x1e0] sm:$0xf]
    %v368 = vld [vmem:[#allocation4 + $0x1e4] sm:$0xf]
    %v369 = vld [vmem:[#allocation4 + $0x1e8] sm:$0xf]
    %v370 = vld [vmem:[#allocation4 + $0x1ec] sm:$0xf]
    %v371 = vld [vmem:[#allocation4 + $0x1f0] sm:$0xf]
    %v372 = vld [vmem:[#allocation4 + $0x1f4] sm:$0xf]
    %v373 = vld [vmem:[#allocation4 + $0x1f8] sm:$0xf]
    %v374 = vld [vmem:[#allocation4 + $0x1fc] sm:$0xf]
    %v375 = vlaneseq
    %v376 = vshrl.u32 %v375, 7
    %v377 = vsub.s32 0, %v376
    %v378 = vrot.slane %v76, %v377
    %v507 = vunpack.c.l.b16 %v247
    %v508 = vunpack.c.l.b16 %v248
    %v509 = vunpack.c.l.b16 %v249
    %v510 = vunpack.c.l.b16 %v250
    %v511 = vunpack.c.l.b16 %v251
    %v512 = vunpack.c.l.b16 %v252
    %v513 = vunpack.c.l.b16 %v253
    %v514 = vunpack.c.l.b16 %v254
    %v515 = vunpack.c.l.b16 %v255
    %v516 = vunpack.c.l.b16 %v256
    %v517 = vunpack.c.l.b16 %v257
    %v518 = vunpack.c.l.b16 %v258
    %v519 = vunpack.c.l.b16 %v259
    %v520 = vunpack.c.l.b16 %v260
    %v521 = vunpack.c.l.b16 %v261
    %v522 = vunpack.c.l.b16 %v262
    %v523 = vunpack.c.l.b16 %v263
    %v524 = vunpack.c.l.b16 %v264
    %v525 = vunpack.c.l.b16 %v265
    %v526 = vunpack.c.l.b16 %v266
    %v527 = vunpack.c.l.b16 %v267
    %v528 = vunpack.c.l.b16 %v268
    %v529 = vunpack.c.l.b16 %v269
    %v530 = vunpack.c.l.b16 %v270
    %v531 = vunpack.c.l.b16 %v271
    %v532 = vunpack.c.l.b16 %v272
    %v533 = vunpack.c.l.b16 %v273
    %v534 = vunpack.c.l.b16 %v274
    %v535 = vunpack.c.l.b16 %v275
    %v536 = vunpack.c.l.b16 %v276
    %v537 = vunpack.c.l.b16 %v277
    %v538 = vunpack.c.l.b16 %v278
    %v539 = vunpack.c.l.b16 %v279
    %v540 = vunpack.c.l.b16 %v280
    %v541 = vunpack.c.l.b16 %v281
    %v542 = vunpack.c.l.b16 %v282
    %v543 = vunpack.c.l.b16 %v283
    %v544 = vunpack.c.l.b16 %v284
    %v545 = vunpack.c.l.b16 %v285
    %v546 = vunpack.c.l.b16 %v286
    %v547 = vunpack.c.l.b16 %v287
    %v548 = vunpack.c.l.b16 %v288
    %v549 = vunpack.c.l.b16 %v289
    %v550 = vunpack.c.l.b16 %v290
    %v551 = vunpack.c.l.b16 %v291
    %v552 = vunpack.c.l.b16 %v292
    %v553 = vunpack.c.l.b16 %v293
    %v554 = vunpack.c.l.b16 %v294
    %v555 = vunpack.c.l.b16 %v295
    %v556 = vunpack.c.l.b16 %v296
    %v557 = vunpack.c.l.b16 %v297
    %v558 = vunpack.c.l.b16 %v298
    %v559 = vunpack.c.l.b16 %v299
    %v560 = vunpack.c.l.b16 %v300
    %v561 = vunpack.c.l.b16 %v301
    %v562 = vunpack.c.l.b16 %v302
    %v563 = vunpack.c.l.b16 %v303
    %v564 = vunpack.c.l.b16 %v304
    %v565 = vunpack.c.l.b16 %v305
    %v566 = vunpack.c.l.b16 %v306
    %v567 = vunpack.c.l.b16 %v307
    %v568 = vunpack.c.l.b16 %v308
    %v569 = vunpack.c.l.b16 %v309
    %v570 = vunpack.c.l.b16 %v310
    %v571 = vunpack.c.l.b16 %v311
    %v572 = vunpack.c.l.b16 %v312
    %v573 = vunpack.c.l.b16 %v313
    %v574 = vunpack.c.l.b16 %v314
    %v575 = vunpack.c.l.b16 %v315
    %v576 = vunpack.c.l.b16 %v316
    %v577 = vunpack.c.l.b16 %v317
    %v578 = vunpack.c.l.b16 %v318
    %v579 = vunpack.c.l.b16 %v319
    %v580 = vunpack.c.l.b16 %v320
    %v581 = vunpack.c.l.b16 %v321
    %v582 = vunpack.c.l.b16 %v322
    %v583 = vunpack.c.l.b16 %v323
    %v584 = vunpack.c.l.b16 %v324
    %v585 = vunpack.c.l.b16 %v325
    %v586 = vunpack.c.l.b16 %v326
    %v587 = vunpack.c.l.b16 %v327
    %v588 = vunpack.c.l.b16 %v328
    %v589 = vunpack.c.l.b16 %v329
    %v590 = vunpack.c.l.b16 %v330
    %v591 = vunpack.c.l.b16 %v331
    %v592 = vunpack.c.l.b16 %v332
    %v593 = vunpack.c.l.b16 %v333
    %v594 = vunpack.c.l.b16 %v334
    %v595 = vunpack.c.l.b16 %v335
    %v596 = vunpack.c.l.b16 %v336
    %v597 = vunpack.c.l.b16 %v337
    %v598 = vunpack.c.l.b16 %v338
    %v599 = vunpack.c.l.b16 %v339
    %v600 = vunpack.c.l.b16 %v340
    %v601 = vunpack.c.l.b16 %v341
    %v602 = vunpack.c.l.b16 %v342
    %v603 = vunpack.c.l.b16 %v343
    %v604 = vunpack.c.l.b16 %v344
    %v605 = vunpack.c.l.b16 %v345
    %v606 = vunpack.c.l.b16 %v346
    %v607 = vunpack.c.l.b16 %v347
    %v608 = vunpack.c.l.b16 %v348
    %v609 = vunpack.c.l.b16 %v349
    %v610 = vunpack.c.l.b16 %v350
    %v611 = vunpack.c.l.b16 %v351
    %v612 = vunpack.c.l.b16 %v352
    %v613 = vunpack.c.l.b16 %v353
    %v614 = vunpack.c.l.b16 %v354
    %v615 = vunpack.c.l.b16 %v355
    %v616 = vunpack.c.l.b16 %v356
    %v617 = vunpack.c.l.b16 %v357
    %v618 = vunpack.c.l.b16 %v358
    %v619 = vunpack.c.l.b16 %v359
    %v620 = vunpack.c.l.b16 %v360
    %v621 = vunpack.c.l.b16 %v361
    %v622 = vunpack.c.l.b16 %v362
    %v623 = vunpack.c.l.b16 %v363
    %v624 = vunpack.c.l.b16 %v364
    %v625 = vunpack.c.l.b16 %v365
    %v626 = vunpack.c.l.b16 %v366
    %v627 = vunpack.c.l.b16 %v367
    %v628 = vunpack.c.l.b16 %v368
    %v629 = vunpack.c.l.b16 %v369
    %v630 = vunpack.c.l.b16 %v370
    %v631 = vunpack.c.l.b16 %v371
    %v632 = vunpack.c.l.b16 %v372
    %v633 = vunpack.c.l.b16 %v373
    %v634 = vunpack.c.l.b16 %v374
    %v635 = vpack.c.b16 %v508, %v507
    %v636 = vpack.c.b16 %v510, %v509
    %v637 = vpack.c.b16 %v512, %v511
    %v638 = vpack.c.b16 %v514, %v513
    %v639 = vpack.c.b16 %v516, %v515
    %v640 = vpack.c.b16 %v518, %v517
    %v641 = vpack.c.b16 %v520, %v519
    %v642 = vpack.c.b16 %v522, %v521
    %v643 = vpack.c.b16 %v524, %v523
    %v644 = vpack.c.b16 %v526, %v525
    %v645 = vpack.c.b16 %v528, %v527
    %v646 = vpack.c.b16 %v530, %v529
    %v647 = vpack.c.b16 %v532, %v531
    %v648 = vpack.c.b16 %v534, %v533
    %v649 = vpack.c.b16 %v536, %v535
    %v650 = vpack.c.b16 %v538, %v537
    %v651 = vpack.c.b16 %v540, %v539
    %v652 = vpack.c.b16 %v542, %v541
    %v653 = vpack.c.b16 %v544, %v543
    %v654 = vpack.c.b16 %v546, %v545
    %v655 = vpack.c.b16 %v548, %v547
    %v656 = vpack.c.b16 %v550, %v549
    %v657 = vpack.c.b16 %v552, %v551
    %v658 = vpack.c.b16 %v554, %v553
    %v659 = vpack.c.b16 %v556, %v555
    %v660 = vpack.c.b16 %v558, %v557
    %v661 = vpack.c.b16 %v560, %v559
    %v662 = vpack.c.b16 %v562, %v561
    %v663 = vpack.c.b16 %v564, %v563
    %v664 = vpack.c.b16 %v566, %v565
    %v665 = vpack.c.b16 %v568, %v567
    %v666 = vpack.c.b16 %v570, %v569
    %v667 = vpack.c.b16 %v572, %v571
    %v668 = vpack.c.b16 %v574, %v573
    %v669 = vpack.c.b16 %v576, %v575
    %v670 = vpack.c.b16 %v578, %v577
    %v671 = vpack.c.b16 %v580, %v579
    %v672 = vpack.c.b16 %v582, %v581
    %v673 = vpack.c.b16 %v584, %v583
    %v674 = vpack.c.b16 %v586, %v585
    %v675 = vpack.c.b16 %v588, %v587
    %v676 = vpack.c.b16 %v590, %v589
    %v677 = vpack.c.b16 %v592, %v591
    %v678 = vpack.c.b16 %v594, %v593
    %v679 = vpack.c.b16 %v596, %v595
    %v680 = vpack.c.b16 %v598, %v597
    %v681 = vpack.c.b16 %v600, %v599
    %v682 = vpack.c.b16 %v602, %v601
    %v683 = vpack.c.b16 %v604, %v603
    %v684 = vpack.c.b16 %v606, %v605
    %v685 = vpack.c.b16 %v608, %v607
    %v686 = vpack.c.b16 %v610, %v609
    %v687 = vpack.c.b16 %v612, %v611
    %v688 = vpack.c.b16 %v614, %v613
    %v689 = vpack.c.b16 %v616, %v615
    %v690 = vpack.c.b16 %v618, %v617
    %v691 = vpack.c.b16 %v620, %v619
    %v692 = vpack.c.b16 %v622, %v621
    %v693 = vpack.c.b16 %v624, %v623
    %v694 = vpack.c.b16 %v626, %v625
    %v695 = vpack.c.b16 %v628, %v627
    %v696 = vpack.c.b16 %v630, %v629
    %v697 = vpack.c.b16 %v632, %v631
    %v698 = vpack.c.b16 %v634, %v633
    %763 = vmatprep.subr.bf16.mxu0 0
    %764 = vmatpush1.bf16.msra.mxu0 %v635
    %765 = vmatprep.subr.bf16.mxu0 0
    %766 = vmatpush1.bf16.msra.mxu0 %v636
    %767 = vmatprep.subr.bf16.mxu0 0
    %768 = vmatpush1.bf16.msra.mxu0 %v637
    %769 = vmatprep.subr.bf16.mxu0 0
    %770 = vmatpush1.bf16.msra.mxu0 %v638
    %771 = vmatprep.subr.bf16.mxu0 0
    %772 = vmatpush1.bf16.msra.mxu0 %v639
    %773 = vmatprep.subr.bf16.mxu0 0
    %774 = vmatpush1.bf16.msra.mxu0 %v640
    %775 = vmatprep.subr.bf16.mxu0 0
    %776 = vmatpush1.bf16.msra.mxu0 %v641
    %777 = vmatprep.subr.bf16.mxu0 0
    %778 = vmatpush1.bf16.msra.mxu0 %v642
    %779 = vmatprep.subr.bf16.mxu0 0
    %780 = vmatpush1.bf16.msra.mxu0 %v643
    %781 = vmatprep.subr.bf16.mxu0 0
    %782 = vmatpush1.bf16.msra.mxu0 %v644
    %783 = vmatprep.subr.bf16.mxu0 0
    %784 = vmatpush1.bf16.msra.mxu0 %v645
    %785 = vmatprep.subr.bf16.mxu0 0
    %786 = vmatpush1.bf16.msra.mxu0 %v646
    %787 = vmatprep.subr.bf16.mxu0 0
    %788 = vmatpush1.bf16.msra.mxu0 %v647
    %789 = vmatprep.subr.bf16.mxu0 0
    %790 = vmatpush1.bf16.msra.mxu0 %v648
    %791 = vmatprep.subr.bf16.mxu0 0
    %792 = vmatpush1.bf16.msra.mxu0 %v649
    %793 = vmatprep.subr.bf16.mxu0 0
    %794 = vmatpush1.bf16.msra.mxu0 %v650
    %795 = vmatprep.mubr.bf16.mxu0 %v240
    %796 = vmatmul.mubr.bf16.gmra.mrb[0].mxu0 %v239
    %v797 = vpop.f32.mrb[0].mxu0
    %v798 = vadd.f32 %v378, %v797
    %v799 = vpop.f32.mrb[0].mxu0
    %v800 = vpop.f32.mrb[0].mxu0
    %v801 = vpop.f32.mrb[0].mxu0
    %802 = vdwg.mxu0
    %803 = vmatprep.subr.bf16.mxu0 0
    %804 = vmatpush1.bf16.msra.mxu0 %v651
    %805 = vmatprep.subr.bf16.mxu0 0
    %806 = vmatpush1.bf16.msra.mxu0 %v652
    %807 = vmatprep.subr.bf16.mxu0 0
    %808 = vmatpush1.bf16.msra.mxu0 %v653
    %809 = vmatprep.subr.bf16.mxu0 0
    %810 = vmatpush1.bf16.msra.mxu0 %v654
    %811 = vmatprep.subr.bf16.mxu0 0
    %812 = vmatpush1.bf16.msra.mxu0 %v655
    %813 = vmatprep.subr.bf16.mxu0 0
    %814 = vmatpush1.bf16.msra.mxu0 %v656
    %815 = vmatprep.subr.bf16.mxu0 0
    %816 = vmatpush1.bf16.msra.mxu0 %v657
    %817 = vmatprep.subr.bf16.mxu0 0
    %818 = vmatpush1.bf16.msra.mxu0 %v658
    %819 = vmatprep.subr.bf16.mxu0 0
    %820 = vmatpush1.bf16.msra.mxu0 %v659
    %821 = vmatprep.subr.bf16.mxu0 0
    %822 = vmatpush1.bf16.msra.mxu0 %v660
    %823 = vmatprep.subr.bf16.mxu0 0
    %824 = vmatpush1.bf16.msra.mxu0 %v661
    %825 = vmatprep.subr.bf16.mxu0 0
    %826 = vmatpush1.bf16.msra.mxu0 %v662
    %827 = vmatprep.subr.bf16.mxu0 0
    %828 = vmatpush1.bf16.msra.mxu0 %v663
    %829 = vmatprep.subr.bf16.mxu0 0
    %830 = vmatpush1.bf16.msra.mxu0 %v664
    %831 = vmatprep.subr.bf16.mxu0 0
    %832 = vmatpush1.bf16.msra.mxu0 %v665
    %833 = vmatprep.subr.bf16.mxu0 0
    %834 = vmatpush1.bf16.msra.mxu0 %v666
    %835 = vmatprep.mubr.bf16.mxu0 %v242
    %836 = vmatmul.mubr.bf16.gmra.mrb[0].mxu0 %v241
    %v837 = vpop.f32.mrb[0].mxu0
    %v838 = vadd.f32 %v798, %v837
    %v839 = vpop.f32.mrb[0].mxu0
    %v840 = vpop.f32.mrb[0].mxu0
    %v841 = vpop.f32.mrb[0].mxu0
    %842 = vdwg.mxu0
    %843 = vmatprep.subr.bf16.mxu0 0
    %844 = vmatpush1.bf16.msra.mxu0 %v667
    %845 = vmatprep.subr.bf16.mxu0 0
    %846 = vmatpush1.bf16.msra.mxu0 %v668
    %847 = vmatprep.subr.bf16.mxu0 0
    %848 = vmatpush1.bf16.msra.mxu0 %v669
    %849 = vmatprep.subr.bf16.mxu0 0
    %850 = vmatpush1.bf16.msra.mxu0 %v670
    %851 = vmatprep.subr.bf16.mxu0 0
    %852 = vmatpush1.bf16.msra.mxu0 %v671
    %853 = vmatprep.subr.bf16.mxu0 0
    %854 = vmatpush1.bf16.msra.mxu0 %v672
    %855 = vmatprep.subr.bf16.mxu0 0
    %856 = vmatpush1.bf16.msra.mxu0 %v673
    %857 = vmatprep.subr.bf16.mxu0 0
    %858 = vmatpush1.bf16.msra.mxu0 %v674
    %859 = vmatprep.subr.bf16.mxu0 0
    %860 = vmatpush1.bf16.msra.mxu0 %v675
    %861 = vmatprep.subr.bf16.mxu0 0
    %862 = vmatpush1.bf16.msra.mxu0 %v676
    %863 = vmatprep.subr.bf16.mxu0 0
    %864 = vmatpush1.bf16.msra.mxu0 %v677
    %865 = vmatprep.subr.bf16.mxu0 0
    %866 = vmatpush1.bf16.msra.mxu0 %v678
    %867 = vmatprep.subr.bf16.mxu0 0
    %868 = vmatpush1.bf16.msra.mxu0 %v679
    %869 = vmatprep.subr.bf16.mxu0 0
    %870 = vmatpush1.bf16.msra.mxu0 %v680
    %871 = vmatprep.subr.bf16.mxu0 0
    %872 = vmatpush1.bf16.msra.mxu0 %v681
    %873 = vmatprep.subr.bf16.mxu0 0
    %874 = vmatpush1.bf16.msra.mxu0 %v682
    %875 = vmatprep.mubr.bf16.mxu0 %v244
    %876 = vmatmul.mubr.bf16.gmra.mrb[0].mxu0 %v243
    %v877 = vpop.f32.mrb[0].mxu0
    %v878 = vadd.f32 %v838, %v877
    %v879 = vpop.f32.mrb[0].mxu0
    %v880 = vpop.f32.mrb[0].mxu0
    %v881 = vpop.f32.mrb[0].mxu0
    %882 = vdwg.mxu0
    %883 = vmatprep.subr.bf16.mxu0 0
    %884 = vmatpush1.bf16.msra.mxu0 %v683
    %885 = vmatprep.subr.bf16.mxu0 0
    %886 = vmatpush1.bf16.msra.mxu0 %v684
    %887 = vmatprep.subr.bf16.mxu0 0
    %888 = vmatpush1.bf16.msra.mxu0 %v685
    %889 = vmatprep.subr.bf16.mxu0 0
    %890 = vmatpush1.bf16.msra.mxu0 %v686
    %891 = vmatprep.subr.bf16.mxu0 0
    %892 = vmatpush1.bf16.msra.mxu0 %v687
    %893 = vmatprep.subr.bf16.mxu0 0
    %894 = vmatpush1.bf16.msra.mxu0 %v688
    %895 = vmatprep.subr.bf16.mxu0 0
    %896 = vmatpush1.bf16.msra.mxu0 %v689
    %897 = vmatprep.subr.bf16.mxu0 0
    %898 = vmatpush1.bf16.msra.mxu0 %v690
    %899 = vmatprep.subr.bf16.mxu0 0
    %900 = vmatpush1.bf16.msra.mxu0 %v691
    %901 = vmatprep.subr.bf16.mxu0 0
    %902 = vmatpush1.bf16.msra.mxu0 %v692
    %903 = vmatprep.subr.bf16.mxu0 0
    %904 = vmatpush1.bf16.msra.mxu0 %v693
    %905 = vmatprep.subr.bf16.mxu0 0
    %906 = vmatpush1.bf16.msra.mxu0 %v694
    %907 = vmatprep.subr.bf16.mxu0 0
    %908 = vmatpush1.bf16.msra.mxu0 %v695
    %909 = vmatprep.subr.bf16.mxu0 0
    %910 = vmatpush1.bf16.msra.mxu0 %v696
    %911 = vmatprep.subr.bf16.mxu0 0
    %912 = vmatpush1.bf16.msra.mxu0 %v697
    %913 = vmatprep.subr.bf16.mxu0 0
    %914 = vmatpush1.bf16.msra.mxu0 %v698
    %915 = vmatprep.mubr.bf16.mxu0 %v246
    %916 = vmatmul.mubr.bf16.gmra.mrb[0].mxu0 %v245
    %v917 = vpop.f32.mrb[0].mxu0
    %v918 = vadd.f32 %v878, %v917
    %v919 = vpop.f32.mrb[0].mxu0
    %v920 = vpop.f32.mrb[0].mxu0
    %v921 = vpop.f32.mrb[0].mxu0
    %922 = vdwg.mxu0
    %v923 = vmax.f32 %v918, 0.0
    %v924 = vpack.c.bf16 %v923, %v923
    %v925 = vld [vmem:[#allocation4 + $0x200] sm:$0xf]
    %v926 = vld [vmem:[#allocation4 + $0x204] sm:$0xf]
    %v927 = vld [vmem:[#allocation4 + $0x208] sm:$0xf]
    %v928 = vld [vmem:[#allocation4 + $0x20c] sm:$0xf]
    %v929 = vld [vmem:[#allocation4 + $0x210] sm:$0xf]
    %v930 = vld [vmem:[#allocation4 + $0x214] sm:$0xf]
    %v931 = vld [vmem:[#allocation4 + $0x218] sm:$0xf]
    %v932 = vld [vmem:[#allocation4 + $0x21c] sm:$0xf]
    %v933 = vld [vmem:[#allocation4 + $0x220] sm:$0xf]
    %v934 = vld [vmem:[#allocation4 + $0x224] sm:$0xf]
    %v935 = vld [vmem:[#allocation4 + $0x228] sm:$0xf]
    %v936 = vld [vmem:[#allocation4 + $0x22c] sm:$0xf]
    %v937 = vld [vmem:[#allocation4 + $0x230] sm:$0xf]
    %v938 = vld [vmem:[#allocation4 + $0x234] sm:$0xf]
    %v939 = vld [vmem:[#allocation4 + $0x238] sm:$0xf]
    %v940 = vld [vmem:[#allocation4 + $0x23c] sm:$0xf]
    %v941 = vlaneseq
    %v942 = vshrl.u32 %v941, 7
    %v943 = vsub.s32 0, %v942
    %v944 = vrot.slane %v77, %v943
    %v961 = vunpack.c.l.b16 %v925
    %v962 = vunpack.c.l.b16 %v926
    %v963 = vunpack.c.l.b16 %v927
    %v964 = vunpack.c.l.b16 %v928
    %v965 = vunpack.c.l.b16 %v929
    %v966 = vunpack.c.l.b16 %v930
    %v967 = vunpack.c.l.b16 %v931
    %v968 = vunpack.c.l.b16 %v932
    %v969 = vunpack.c.l.b16 %v933
    %v970 = vunpack.c.l.b16 %v934
    %v971 = vunpack.c.l.b16 %v935
    %v972 = vunpack.c.l.b16 %v936
    %v973 = vunpack.c.l.b16 %v937
    %v974 = vunpack.c.l.b16 %v938
    %v975 = vunpack.c.l.b16 %v939
    %v976 = vunpack.c.l.b16 %v940
    %v977 = vpack.c.b16 %v962, %v961
    %v978 = vpack.c.b16 %v964, %v963
    %v979 = vpack.c.b16 %v966, %v965
    %v980 = vpack.c.b16 %v968, %v967
    %v981 = vpack.c.b16 %v970, %v969
    %v982 = vpack.c.b16 %v972, %v971
    %v983 = vpack.c.b16 %v974, %v973
    %v984 = vpack.c.b16 %v976, %v975
    %993 = vmatprep.subr.bf16.mxu0 0
    %994 = vmatpush1.bf16.msra.mxu0 %v977
    %995 = vmatprep.subr.bf16.mxu0 0
    %996 = vmatpush1.bf16.msra.mxu0 %v978
    %997 = vmatprep.subr.bf16.mxu0 0
    %998 = vmatpush1.bf16.msra.mxu0 %v979
    %999 = vmatprep.subr.bf16.mxu0 0
    %1000 = vmatpush1.bf16.msra.mxu0 %v980
    %1001 = vmatprep.subr.bf16.mxu0 0
    %1002 = vmatpush1.bf16.msra.mxu0 %v981
    %1003 = vmatprep.subr.bf16.mxu0 0
    %1004 = vmatpush1.bf16.msra.mxu0 %v982
    %1005 = vmatprep.subr.bf16.mxu0 0
    %1006 = vmatpush1.bf16.msra.mxu0 %v983
    %1007 = vmatprep.subr.bf16.mxu0 0
    %1008 = vmatpush1.bf16.msra.mxu0 %v984
    %1009 = vmatprep.subr.bf16.mxu0 0
    %1010 = vmatpush1.bf16.msra.mxu0 0
    %1011 = vmatprep.subr.bf16.mxu0 0
    %1012 = vmatpush1.bf16.msra.mxu0 0
    %1013 = vmatprep.subr.bf16.mxu0 0
    %1014 = vmatpush1.bf16.msra.mxu0 0
    %1015 = vmatprep.subr.bf16.mxu0 0
    %1016 = vmatpush1.bf16.msra.mxu0 0
    %1017 = vmatprep.subr.bf16.mxu0 0
    %1018 = vmatpush1.bf16.msra.mxu0 0
    %1019 = vmatprep.subr.bf16.mxu0 0
    %1020 = vmatpush1.bf16.msra.mxu0 0
    %1021 = vmatprep.subr.bf16.mxu0 0
    %1022 = vmatpush1.bf16.msra.mxu0 0
    %1023 = vmatprep.subr.bf16.mxu0 0
    %1024 = vmatpush1.bf16.msra.mxu0 0
    %1025 = vmatprep.mubr.bf16.mxu0 0
    %1026 = vmatmul.mubr.bf16.gmra.mrb[0].mxu0 %v924
    %v1027 = vpop.f32.mrb[0].mxu0
    %v1028 = vadd.f32 %v944, %v1027
    %v1029 = vpop.f32.mrb[0].mxu0
    %v1030 = vpop.f32.mrb[0].mxu0
    %v1031 = vpop.f32.mrb[0].mxu0
    %1032 = vdwg.mxu0
    %v1034 = vrot.slane %v1028, 2
    %v1036 = vsel %vm82, %v1028, %v1034
    %v1037 = vrot.slane %v1028, 6
    %v1039 = vsel %vm82, %v1028, %v1037
    %v1041 = vrot.slane %v1036, 4
    %v1044 = vrot.slane %v1039, 6
    %v1046 = vsel %vm221, %v1028, %v1034
    %v1047 = vsel %vm230, %v1046, %v1041
    %vm1048 = vcmask 1045504
    %v1049 = vsel %vm1048, %v1047, %v1044
    %v1050 = vpack.c.bf16 %v1049, %v1049
    %v1051 = vld [vmem:[#allocation4 + $0x240] sm:$0xf]
    %v1052 = vld [vmem:[#allocation4 + $0x244] sm:$0xf]
    %v1053 = vld [vmem:[#allocation4 + $0x248] sm:$0xf]
    %v1054 = vld [vmem:[#allocation4 + $0x24c] sm:$0xf]
    %v1055 = vld [vmem:[#allocation4 + $0x250] sm:$0xf]
    %v1056 = vld [vmem:[#allocation4 + $0x254] sm:$0xf]
    %v1057 = vld [vmem:[#allocation4 + $0x258] sm:$0xf]
    %v1058 = vld [vmem:[#allocation4 + $0x25c] sm:$0xf]
    %v1059 = vld [vmem:[#allocation4 + $0x260] sm:$0xf]
    %v1060 = vld [vmem:[#allocation4 + $0x264] sm:$0xf]
    %v1061 = vld [vmem:[#allocation4 + $0x268] sm:$0xf]
    %v1062 = vld [vmem:[#allocation4 + $0x26c] sm:$0xf]
    %v1063 = vld [vmem:[#allocation4 + $0x270] sm:$0xf]
    %v1064 = vld [vmem:[#allocation4 + $0x274] sm:$0xf]
    %v1065 = vld [vmem:[#allocation4 + $0x278] sm:$0xf]
    %v1066 = vld [vmem:[#allocation4 + $0x27c] sm:$0xf]
    %v1067 = vlaneseq
    %v1068 = vshrl.u32 %v1067, 7
    %v1069 = vsub.s32 0, %v1068
    %v1070 = vrot.slane %v78, %v1069
    %v1087 = vunpack.c.l.b16 %v1051
    %v1088 = vunpack.c.l.b16 %v1052
    %v1089 = vunpack.c.l.b16 %v1053
    %v1090 = vunpack.c.l.b16 %v1054
    %v1091 = vunpack.c.l.b16 %v1055
    %v1092 = vunpack.c.l.b16 %v1056
    %v1093 = vunpack.c.l.b16 %v1057
    %v1094 = vunpack.c.l.b16 %v1058
    %v1095 = vunpack.c.l.b16 %v1059
    %v1096 = vunpack.c.l.b16 %v1060
    %v1097 = vunpack.c.l.b16 %v1061
    %v1098 = vunpack.c.l.b16 %v1062
    %v1099 = vunpack.c.l.b16 %v1063
    %v1100 = vunpack.c.l.b16 %v1064
    %v1101 = vunpack.c.l.b16 %v1065
    %v1102 = vunpack.c.l.b16 %v1066
    %v1103 = vpack.c.b16 %v1088, %v1087
    %v1104 = vpack.c.b16 %v1090, %v1089
    %v1105 = vpack.c.b16 %v1092, %v1091
    %v1106 = vpack.c.b16 %v1094, %v1093
    %v1107 = vpack.c.b16 %v1096, %v1095
    %v1108 = vpack.c.b16 %v1098, %v1097
    %v1109 = vpack.c.b16 %v1100, %v1099
    %v1110 = vpack.c.b16 %v1102, %v1101
    %1119 = vmatprep.subr.bf16.mxu0 0
    %1120 = vmatpush1.bf16.msra.mxu0 %v1103
    %1121 = vmatprep.subr.bf16.mxu0 0
    %1122 = vmatpush1.bf16.msra.mxu0 %v1104
    %1123 = vmatprep.subr.bf16.mxu0 0
    %1124 = vmatpush1.bf16.msra.mxu0 %v1105
    %1125 = vmatprep.subr.bf16.mxu0 0
    %1126 = vmatpush1.bf16.msra.mxu0 %v1106
    %1127 = vmatprep.subr.bf16.mxu0 0
    %1128 = vmatpush1.bf16.msra.mxu0 %v1107
    %1129 = vmatprep.subr.bf16.mxu0 0
    %1130 = vmatpush1.bf16.msra.mxu0 %v1108
    %1131 = vmatprep.subr.bf16.mxu0 0
    %1132 = vmatpush1.bf16.msra.mxu0 %v1109
    %1133 = vmatprep.subr.bf16.mxu0 0
    %1134 = vmatpush1.bf16.msra.mxu0 %v1110
    %1135 = vmatprep.subr.bf16.mxu0 0
    %1136 = vmatpush1.bf16.msra.mxu0 0
    %1137 = vmatprep.subr.bf16.mxu0 0
    %1138 = vmatpush1.bf16.msra.mxu0 0
    %1139 = vmatprep.subr.bf16.mxu0 0
    %1140 = vmatpush1.bf16.msra.mxu0 0
    %1141 = vmatprep.subr.bf16.mxu0 0
    %1142 = vmatpush1.bf16.msra.mxu0 0
    %1143 = vmatprep.subr.bf16.mxu0 0
    %1144 = vmatpush1.bf16.msra.mxu0 0
    %1145 = vmatprep.subr.bf16.mxu0 0
    %1146 = vmatpush1.bf16.msra.mxu0 0
    %1147 = vmatprep.subr.bf16.mxu0 0
    %1148 = vmatpush1.bf16.msra.mxu0 0
    %1149 = vmatprep.subr.bf16.mxu0 0
    %1150 = vmatpush1.bf16.msra.mxu0 0
    %1151 = vmatprep.mubr.bf16.mxu0 0
    %1152 = vmatmul.mubr.bf16.gmra.mrb[0].mxu0 %v1050
    %v1153 = vpop.f32.mrb[0].mxu0
    %v1154 = vadd.f32 %v1070, %v1153
    %v1155 = vpop.f32.mrb[0].mxu0
    %v1156 = vpop.f32.mrb[0].mxu0
    %v1157 = vpop.f32.mrb[0].mxu0
    %1158 = vdwg.mxu0
    %v1159 = vmax.f32 %v1154, 0.0
    %s1160 = smul.u32 4, 16
    %s1161 = smul.u32 %s1160, 8
    %s1162 = sshll.u32 %s1161, 4
    %1163 = dma.done [#allocation3], %s1162
    %v1164 = vpack.c.bf16 %v1159, %v1159
    %v1165 = vld [vmem:[#allocation2] sm:$0xff]
    %v1166 = vld [vmem:[#allocation2 + $0x8] sm:$0xff]
    %v1167 = vld [vmem:[#allocation2 + $0x10] sm:$0xff]
    %v1168 = vld [vmem:[#allocation2 + $0x18] sm:$0xff]
    %v1169 = vld [vmem:[#allocation2 + $0x20] sm:$0xff]
    %v1170 = vld [vmem:[#allocation2 + $0x28] sm:$0xff]
    %v1171 = vld [vmem:[#allocation2 + $0x30] sm:$0xff]
    %v1172 = vld [vmem:[#allocation2 + $0x38] sm:$0xff]
    %v1173 = vld [vmem:[#allocation2 + $0x40] sm:$0xff]
    %v1174 = vld [vmem:[#allocation2 + $0x48] sm:$0xff]
    %v1175 = vld [vmem:[#allocation2 + $0x50] sm:$0xff]
    %v1176 = vld [vmem:[#allocation2 + $0x58] sm:$0xff]
    %v1177 = vld [vmem:[#allocation2 + $0x60] sm:$0xff]
    %v1178 = vld [vmem:[#allocation2 + $0x68] sm:$0xff]
    %v1179 = vld [vmem:[#allocation2 + $0x70] sm:$0xff]
    %v1180 = vld [vmem:[#allocation2 + $0x78] sm:$0xff]
    %v1181 = vld [vmem:[#allocation2 + $0x80] sm:$0xff]
    %v1182 = vld [vmem:[#allocation2 + $0x88] sm:$0xff]
    %v1183 = vld [vmem:[#allocation2 + $0x90] sm:$0xff]
    %v1184 = vld [vmem:[#allocation2 + $0x98] sm:$0xff]
    %v1185 = vld [vmem:[#allocation2 + $0xa0] sm:$0xff]
    %v1186 = vld [vmem:[#allocation2 + $0xa8] sm:$0xff]
    %v1187 = vld [vmem:[#allocation2 + $0xb0] sm:$0xff]
    %v1188 = vld [vmem:[#allocation2 + $0xb8] sm:$0xff]
    %v1189 = vld [vmem:[#allocation2 + $0xc0] sm:$0xff]
    %v1190 = vld [vmem:[#allocation2 + $0xc8] sm:$0xff]
    %v1191 = vld [vmem:[#allocation2 + $0xd0] sm:$0xff]
    %v1192 = vld [vmem:[#allocation2 + $0xd8] sm:$0xff]
    %v1193 = vld [vmem:[#allocation2 + $0xe0] sm:$0xff]
    %v1194 = vld [vmem:[#allocation2 + $0xe8] sm:$0xff]
    %v1195 = vld [vmem:[#allocation2 + $0xf0] sm:$0xff]
    %v1196 = vld [vmem:[#allocation2 + $0xf8] sm:$0xff]
    %v1197 = vld [vmem:[#allocation2 + $0x100] sm:$0xff]
    %v1198 = vld [vmem:[#allocation2 + $0x108] sm:$0xff]
    %v1199 = vld [vmem:[#allocation2 + $0x110] sm:$0xff]
    %v1200 = vld [vmem:[#allocation2 + $0x118] sm:$0xff]
    %v1201 = vld [vmem:[#allocation2 + $0x120] sm:$0xff]
    %v1202 = vld [vmem:[#allocation2 + $0x128] sm:$0xff]
    %v1203 = vld [vmem:[#allocation2 + $0x130] sm:$0xff]
    %v1204 = vld [vmem:[#allocation2 + $0x138] sm:$0xff]
    %v1205 = vld [vmem:[#allocation2 + $0x140] sm:$0xff]
    %v1206 = vld [vmem:[#allocation2 + $0x148] sm:$0xff]
    %v1207 = vld [vmem:[#allocation2 + $0x150] sm:$0xff]
    %v1208 = vld [vmem:[#allocation2 + $0x158] sm:$0xff]
    %v1209 = vld [vmem:[#allocation2 + $0x160] sm:$0xff]
    %v1210 = vld [vmem:[#allocation2 + $0x168] sm:$0xff]
    %v1211 = vld [vmem:[#allocation2 + $0x170] sm:$0xff]
    %v1212 = vld [vmem:[#allocation2 + $0x178] sm:$0xff]
    %v1213 = vld [vmem:[#allocation2 + $0x180] sm:$0xff]
    %v1214 = vld [vmem:[#allocation2 + $0x188] sm:$0xff]
    %v1215 = vld [vmem:[#allocation2 + $0x190] sm:$0xff]
    %v1216 = vld [vmem:[#allocation2 + $0x198] sm:$0xff]
    %v1217 = vld [vmem:[#allocation2 + $0x1a0] sm:$0xff]
    %v1218 = vld [vmem:[#allocation2 + $0x1a8] sm:$0xff]
    %v1219 = vld [vmem:[#allocation2 + $0x1b0] sm:$0xff]
    %v1220 = vld [vmem:[#allocation2 + $0x1b8] sm:$0xff]
    %v1221 = vld [vmem:[#allocation2 + $0x1c0] sm:$0xff]
    %v1222 = vld [vmem:[#allocation2 + $0x1c8] sm:$0xff]
    %v1223 = vld [vmem:[#allocation2 + $0x1d0] sm:$0xff]
    %v1224 = vld [vmem:[#allocation2 + $0x1d8] sm:$0xff]
    %v1225 = vld [vmem:[#allocation2 + $0x1e0] sm:$0xff]
    %v1226 = vld [vmem:[#allocation2 + $0x1e8] sm:$0xff]
    %v1227 = vld [vmem:[#allocation2 + $0x1f0] sm:$0xff]
    %v1228 = vld [vmem:[#allocation2 + $0x1f8] sm:$0xff]
    %v1230 = vlaneseq
    %v1231 = vshrl.u32 %v1230, 7
    %v1232 = vsub.s32 0, %v1231
    %v1233 = vrot.slane %v79, %v1232
    %v1234 = vlaneseq
    %v1235 = vshrl.u32 %v1234, 7
    %v1236 = vsub.s32 1, %v1235
    %v1237 = vrot.slane %v79, %v1236
    %v1238 = vlaneseq
    %v1239 = vshrl.u32 %v1238, 7
    %v1240 = vsub.s32 2, %v1239
    %v1241 = vrot.slane %v79, %v1240
    %v1242 = vlaneseq
    %v1243 = vshrl.u32 %v1242, 7
    %v1244 = vsub.s32 3, %v1243
    %v1245 = vrot.slane %v79, %v1244
    %v1246 = vlaneseq
    %v1247 = vshrl.u32 %v1246, 7
    %v1248 = vsub.s32 4, %v1247
    %v1249 = vrot.slane %v79, %v1248
    %v1250 = vlaneseq
    %v1251 = vshrl.u32 %v1250, 7
    %v1252 = vsub.s32 5, %v1251
    %v1253 = vrot.slane %v79, %v1252
    %v1254 = vlaneseq
    %v1255 = vshrl.u32 %v1254, 7
    %v1256 = vsub.s32 6, %v1255
    %v1257 = vrot.slane %v79, %v1256
    %v1258 = vlaneseq
    %v1259 = vshrl.u32 %v1258, 7
    %v1260 = vsub.s32 7, %v1259
    %v1261 = vrot.slane %v79, %v1260
    %1270 = vmatprep.subr.bf16.mxu0 %v1166
    %1271 = vmatpush1.bf16.msra.mxu0 %v1165
    %1272 = vmatprep.subr.bf16.mxu0 %v1174
    %1273 = vmatpush1.bf16.msra.mxu0 %v1173
    %1274 = vmatprep.subr.bf16.mxu0 %v1182
    %1275 = vmatpush1.bf16.msra.mxu0 %v1181
    %1276 = vmatprep.subr.bf16.mxu0 %v1190
    %1277 = vmatpush1.bf16.msra.mxu0 %v1189
    %1278 = vmatprep.subr.bf16.mxu0 %v1198
    %1279 = vmatpush1.bf16.msra.mxu0 %v1197
    %1280 = vmatprep.subr.bf16.mxu0 %v1206
    %1281 = vmatpush1.bf16.msra.mxu0 %v1205
    %1282 = vmatprep.subr.bf16.mxu0 %v1214
    %1283 = vmatpush1.bf16.msra.mxu0 %v1213
    %1284 = vmatprep.subr.bf16.mxu0 %v1222
    %1285 = vmatpush1.bf16.msra.mxu0 %v1221
    %1286 = vmatprep.subr.bf16.mxu0 0
    %1287 = vmatpush1.bf16.msra.mxu0 0
    %1288 = vmatprep.subr.bf16.mxu0 0
    %1289 = vmatpush1.bf16.msra.mxu0 0
    %1290 = vmatprep.subr.bf16.mxu0 0
    %1291 = vmatpush1.bf16.msra.mxu0 0
    %1292 = vmatprep.subr.bf16.mxu0 0
    %1293 = vmatpush1.bf16.msra.mxu0 0
    %1294 = vmatprep.subr.bf16.mxu0 0
    %1295 = vmatpush1.bf16.msra.mxu0 0
    %1296 = vmatprep.subr.bf16.mxu0 0
    %1297 = vmatpush1.bf16.msra.mxu0 0
    %1298 = vmatprep.subr.bf16.mxu0 0
    %1299 = vmatpush1.bf16.msra.mxu0 0
    %1300 = vmatprep.subr.bf16.mxu0 0
    %1301 = vmatpush1.bf16.msra.mxu0 0
    %1302 = vmatprep.mubr.bf16.mxu0 0
    %1303 = vmatmul.mubr.bf16.gmra.mrb[0].mxu0 %v1164
    %v1304 = vpop.f32.mrb[0].mxu0
    %v1305 = vadd.f32 %v1233, %v1304
    %v1306 = vpop.f32.mrb[0].mxu0
    %v1307 = vadd.f32 %v1237, %v1306
    %v1308 = vpop.f32.mrb[0].mxu0
    %v1309 = vpop.f32.mrb[0].mxu0
    %1310 = vdwg.mxu0
    %1311 = vmatprep.subr.bf16.mxu0 %v1168
    %1312 = vmatpush1.bf16.msra.mxu0 %v1167
    %1313 = vmatprep.subr.bf16.mxu0 %v1176
    %1314 = vmatpush1.bf16.msra.mxu0 %v1175
    %1315 = vmatprep.subr.bf16.mxu0 %v1184
    %1316 = vmatpush1.bf16.msra.mxu0 %v1183
    %1317 = vmatprep.subr.bf16.mxu0 %v1192
    %1318 = vmatpush1.bf16.msra.mxu0 %v1191
    %1319 = vmatprep.subr.bf16.mxu0 %v1200
    %1320 = vmatpush1.bf16.msra.mxu0 %v1199
    %1321 = vmatprep.subr.bf16.mxu0 %v1208
    %1322 = vmatpush1.bf16.msra.mxu0 %v1207
    %1323 = vmatprep.subr.bf16.mxu0 %v1216
    %1324 = vmatpush1.bf16.msra.mxu0 %v1215
    %1325 = vmatprep.subr.bf16.mxu0 %v1224
    %1326 = vmatpush1.bf16.msra.mxu0 %v1223
    %1327 = vmatprep.subr.bf16.mxu0 0
    %1328 = vmatpush1.bf16.msra.mxu0 0
    %1329 = vmatprep.subr.bf16.mxu0 0
    %1330 = vmatpush1.bf16.msra.mxu0 0
    %1331 = vmatprep.subr.bf16.mxu0 0
    %1332 = vmatpush1.bf16.msra.mxu0 0
    %1333 = vmatprep.subr.bf16.mxu0 0
    %1334 = vmatpush1.bf16.msra.mxu0 0
    %1335 = vmatprep.subr.bf16.mxu0 0
    %1336 = vmatpush1.bf16.msra.mxu0 0
    %1337 = vmatprep.subr.bf16.mxu0 0
    %1338 = vmatpush1.bf16.msra.mxu0 0
    %1339 = vmatprep.subr.bf16.mxu0 0
    %1340 = vmatpush1.bf16.msra.mxu0 0
    %1341 = vmatprep.subr.bf16.mxu0 0
    %1342 = vmatpush1.bf16.msra.mxu0 0
    %1343 = vmatprep.mubr.bf16.mxu0 0
    %1344 = vmatmul.mubr.bf16.gmra.mrb[0].mxu0 %v1164
    %v1345 = vpop.f32.mrb[0].mxu0
    %v1346 = vadd.f32 %v1241, %v1345
    %v1347 = vpop.f32.mrb[0].mxu0
    %v1348 = vadd.f32 %v1245, %v1347
    %v1349 = vpop.f32.mrb[0].mxu0
    %v1350 = vpop.f32.mrb[0].mxu0
    %1351 = vdwg.mxu0
    %1352 = vmatprep.subr.bf16.mxu0 %v1170
    %1353 = vmatpush1.bf16.msra.mxu0 %v1169
    %1354 = vmatprep.subr.bf16.mxu0 %v1178
    %1355 = vmatpush1.bf16.msra.mxu0 %v1177
    %1356 = vmatprep.subr.bf16.mxu0 %v1186
    %1357 = vmatpush1.bf16.msra.mxu0 %v1185
    %1358 = vmatprep.subr.bf16.mxu0 %v1194
    %1359 = vmatpush1.bf16.msra.mxu0 %v1193
    %1360 = vmatprep.subr.bf16.mxu0 %v1202
    %1361 = vmatpush1.bf16.msra.mxu0 %v1201
    %1362 = vmatprep.subr.bf16.mxu0 %v1210
    %1363 = vmatpush1.bf16.msra.mxu0 %v1209
    %1364 = vmatprep.subr.bf16.mxu0 %v1218
    %1365 = vmatpush1.bf16.msra.mxu0 %v1217
    %1366 = vmatprep.subr.bf16.mxu0 %v1226
    %1367 = vmatpush1.bf16.msra.mxu0 %v1225
    %1368 = vmatprep.subr.bf16.mxu0 0
    %1369 = vmatpush1.bf16.msra.mxu0 0
    %1370 = vmatprep.subr.bf16.mxu0 0
    %1371 = vmatpush1.bf16.msra.mxu0 0
    %1372 = vmatprep.subr.bf16.mxu0 0
    %1373 = vmatpush1.bf16.msra.mxu0 0
    %1374 = vmatprep.subr.bf16.mxu0 0
    %1375 = vmatpush1.bf16.msra.mxu0 0
    %1376 = vmatprep.subr.bf16.mxu0 0
    %1377 = vmatpush1.bf16.msra.mxu0 0
    %1378 = vmatprep.subr.bf16.mxu0 0
    %1379 = vmatpush1.bf16.msra.mxu0 0
    %1380 = vmatprep.subr.bf16.mxu0 0
    %1381 = vmatpush1.bf16.msra.mxu0 0
    %1382 = vmatprep.subr.bf16.mxu0 0
    %1383 = vmatpush1.bf16.msra.mxu0 0
    %1384 = vmatprep.mubr.bf16.mxu0 0
    %1385 = vmatmul.mubr.bf16.gmra.mrb[0].mxu0 %v1164
    %v1386 = vpop.f32.mrb[0].mxu0
    %v1387 = vadd.f32 %v1249, %v1386
    %v1388 = vpop.f32.mrb[0].mxu0
    %v1389 = vadd.f32 %v1253, %v1388
    %v1390 = vpop.f32.mrb[0].mxu0
    %v1391 = vpop.f32.mrb[0].mxu0
    %1392 = vdwg.mxu0
    %1393 = vmatprep.subr.bf16.mxu0 %v1172
    %1394 = vmatpush1.bf16.msra.mxu0 %v1171
    %1395 = vmatprep.subr.bf16.mxu0 %v1180
    %1396 = vmatpush1.bf16.msra.mxu0 %v1179
    %1397 = vmatprep.subr.bf16.mxu0 %v1188
    %1398 = vmatpush1.bf16.msra.mxu0 %v1187
    %1399 = vmatprep.subr.bf16.mxu0 %v1196
    %1400 = vmatpush1.bf16.msra.mxu0 %v1195
    %1401 = vmatprep.subr.bf16.mxu0 %v1204
    %1402 = vmatpush1.bf16.msra.mxu0 %v1203
    %1403 = vmatprep.subr.bf16.mxu0 %v1212
    %1404 = vmatpush1.bf16.msra.mxu0 %v1211
    %1405 = vmatprep.subr.bf16.mxu0 %v1220
    %1406 = vmatpush1.bf16.msra.mxu0 %v1219
    %1407 = vmatprep.subr.bf16.mxu0 %v1228
    %1408 = vmatpush1.bf16.msra.mxu0 %v1227
    %1409 = vmatprep.subr.bf16.mxu0 0
    %1410 = vmatpush1.bf16.msra.mxu0 0
    %1411 = vmatprep.subr.bf16.mxu0 0
    %1412 = vmatpush1.bf16.msra.mxu0 0
    %1413 = vmatprep.subr.bf16.mxu0 0
    %1414 = vmatpush1.bf16.msra.mxu0 0
    %1415 = vmatprep.subr.bf16.mxu0 0
    %1416 = vmatpush1.bf16.msra.mxu0 0
    %1417 = vmatprep.subr.bf16.mxu0 0
    %1418 = vmatpush1.bf16.msra.mxu0 0
    %1419 = vmatprep.subr.bf16.mxu0 0
    %1420 = vmatpush1.bf16.msra.mxu0 0
    %1421 = vmatprep.subr.bf16.mxu0 0
    %1422 = vmatpush1.bf16.msra.mxu0 0
    %1423 = vmatprep.subr.bf16.mxu0 0
    %1424 = vmatpush1.bf16.msra.mxu0 0
    %1425 = vmatprep.mubr.bf16.mxu0 0
    %1426 = vmatmul.mubr.bf16.gmra.mrb[0].mxu0 %v1164
    %v1427 = vpop.f32.mrb[0].mxu0
    %v1428 = vadd.f32 %v1257, %v1427
    %v1429 = vpop.f32.mrb[0].mxu0
    %v1430 = vadd.f32 %v1261, %v1429
    %v1431 = vpop.f32.mrb[0].mxu0
    %v1432 = vpop.f32.mrb[0].mxu0
    %1433 = vdwg.mxu0
    %v1434 = vxor.u32 %v1305, 2147483648
    %v1435 = vxor.u32 %v1307, 2147483648
    %v1436 = vxor.u32 %v1346, 2147483648
    %v1437 = vxor.u32 %v1348, 2147483648
    %v1438 = vxor.u32 %v1387, 2147483648
    %v1439 = vxor.u32 %v1389, 2147483648
    %v1440 = vxor.u32 %v1428, 2147483648
    %v1441 = vxor.u32 %v1430, 2147483648
    %v1442 = vmul.f32 %v1434, 1.442695
    %v1443 = vpow.pop %v1442
    %v1444 = vmul.f32 %v1435, 1.442695
    %v1445 = vpow.pop %v1444
    %v1446 = vmul.f32 %v1436, 1.442695
    %v1447 = vpow.pop %v1446
    %v1448 = vmul.f32 %v1437, 1.442695
    %v1449 = vpow.pop %v1448
    %v1450 = vmul.f32 %v1438, 1.442695
    %v1451 = vpow.pop %v1450
    %v1452 = vmul.f32 %v1439, 1.442695
    %v1453 = vpow.pop %v1452
    %v1454 = vmul.f32 %v1440, 1.442695
    %v1455 = vpow.pop %v1454
    %v1456 = vmul.f32 %v1441, 1.442695
    %v1457 = vpow.pop %v1456
    %v1458 = vadd.f32 %v1443, 1.0
    %v1459 = vadd.f32 %v1445, 1.0
    %v1460 = vadd.f32 %v1447, 1.0
    %v1461 = vadd.f32 %v1449, 1.0
    %v1462 = vadd.f32 %v1451, 1.0
    %v1463 = vadd.f32 %v1453, 1.0
    %v1464 = vadd.f32 %v1455, 1.0
    %v1465 = vadd.f32 %v1457, 1.0
    %v1466 = vrcp.pop %v1458
    %v1467 = vmul.f32 1.0, %v1466
    %v1468 = vrcp.pop %v1459
    %v1469 = vmul.f32 1.0, %v1468
    %v1470 = vrcp.pop %v1460
    %v1471 = vmul.f32 1.0, %v1470
    %v1472 = vrcp.pop %v1461
    %v1473 = vmul.f32 1.0, %v1472
    %v1474 = vrcp.pop %v1462
    %v1475 = vmul.f32 1.0, %v1474
    %v1476 = vrcp.pop %v1463
    %v1477 = vmul.f32 1.0, %v1476
    %v1478 = vrcp.pop %v1464
    %v1479 = vmul.f32 1.0, %v1478
    %v1480 = vrcp.pop %v1465
    %v1481 = vmul.f32 1.0, %v1480
    %1482 = vst [vmem:[%s7] sm:$0xff] %v1467
    %1483 = vst [vmem:[%s7 + $0x8] sm:$0xff] %v1469
    %1484 = vst [vmem:[%s7 + $0x10] sm:$0xff] %v1471
    %1485 = vst [vmem:[%s7 + $0x18] sm:$0xff] %v1473
    %1486 = vst [vmem:[%s7 + $0x20] sm:$0xff] %v1475
    %1487 = vst [vmem:[%s7 + $0x28] sm:$0xff] %v1477
    %1488 = vst [vmem:[%s7 + $0x30] sm:$0xff] %v1479
    %1489 = vst [vmem:[%s7 + $0x38] sm:$0xff] %v1481
    %v1490 = vpack.c.bf16 %v1467, %v1467
    %v1491 = vpack.c.bf16 %v1469, %v1469
    %v1492 = vpack.c.bf16 %v1471, %v1471
    %v1493 = vpack.c.bf16 %v1473, %v1473
    %v1494 = vpack.c.bf16 %v1475, %v1475
    %v1495 = vpack.c.bf16 %v1477, %v1477
    %v1496 = vpack.c.bf16 %v1479, %v1479
    %v1497 = vpack.c.bf16 %v1481, %v1481
    %v1498 = vld [vmem:[#allocation4] sm:$0xf]
    %v1499 = vld [vmem:[#allocation4 + $0x4] sm:$0xf]
    %v1500 = vld [vmem:[#allocation4 + $0x8] sm:$0xf]
    %v1501 = vld [vmem:[#allocation4 + $0xc] sm:$0xf]
    %v1502 = vld [vmem:[#allocation4 + $0x10] sm:$0xf]
    %v1503 = vld [vmem:[#allocation4 + $0x14] sm:$0xf]
    %v1504 = vld [vmem:[#allocation4 + $0x18] sm:$0xf]
    %v1505 = vld [vmem:[#allocation4 + $0x1c] sm:$0xf]
    %v1506 = vld [vmem:[#allocation4 + $0x20] sm:$0xf]
    %v1507 = vld [vmem:[#allocation4 + $0x24] sm:$0xf]
    %v1508 = vld [vmem:[#allocation4 + $0x28] sm:$0xf]
    %v1509 = vld [vmem:[#allocation4 + $0x2c] sm:$0xf]
    %v1510 = vld [vmem:[#allocation4 + $0x30] sm:$0xf]
    %v1511 = vld [vmem:[#allocation4 + $0x34] sm:$0xf]
    %v1512 = vld [vmem:[#allocation4 + $0x38] sm:$0xf]
    %v1513 = vld [vmem:[#allocation4 + $0x3c] sm:$0xf]
    %v1514 = vld [vmem:[#allocation4 + $0x40] sm:$0xf]
    %v1515 = vld [vmem:[#allocation4 + $0x44] sm:$0xf]
    %v1516 = vld [vmem:[#allocation4 + $0x48] sm:$0xf]
    %v1517 = vld [vmem:[#allocation4 + $0x4c] sm:$0xf]
    %v1518 = vld [vmem:[#allocation4 + $0x50] sm:$0xf]
    %v1519 = vld [vmem:[#allocation4 + $0x54] sm:$0xf]
    %v1520 = vld [vmem:[#allocation4 + $0x58] sm:$0xf]
    %v1521 = vld [vmem:[#allocation4 + $0x5c] sm:$0xf]
    %v1522 = vld [vmem:[#allocation4 + $0x60] sm:$0xf]
    %v1523 = vld [vmem:[#allocation4 + $0x64] sm:$0xf]
    %v1524 = vld [vmem:[#allocation4 + $0x68] sm:$0xf]
    %v1525 = vld [vmem:[#allocation4 + $0x6c] sm:$0xf]
    %v1526 = vld [vmem:[#allocation4 + $0x70] sm:$0xf]
    %v1527 = vld [vmem:[#allocation4 + $0x74] sm:$0xf]
    %v1528 = vld [vmem:[#allocation4 + $0x78] sm:$0xf]
    %v1529 = vld [vmem:[#allocation4 + $0x7c] sm:$0xf]
    %v1530 = vld [vmem:[#allocation4 + $0x80] sm:$0xf]
    %v1531 = vld [vmem:[#allocation4 + $0x84] sm:$0xf]
    %v1532 = vld [vmem:[#allocation4 + $0x88] sm:$0xf]
    %v1533 = vld [vmem:[#allocation4 + $0x8c] sm:$0xf]
    %v1534 = vld [vmem:[#allocation4 + $0x90] sm:$0xf]
    %v1535 = vld [vmem:[#allocation4 + $0x94] sm:$0xf]
    %v1536 = vld [vmem:[#allocation4 + $0x98] sm:$0xf]
    %v1537 = vld [vmem:[#allocation4 + $0x9c] sm:$0xf]
    %v1538 = vld [vmem:[#allocation4 + $0xa0] sm:$0xf]
    %v1539 = vld [vmem:[#allocation4 + $0xa4] sm:$0xf]
    %v1540 = vld [vmem:[#allocation4 + $0xa8] sm:$0xf]
    %v1541 = vld [vmem:[#allocation4 + $0xac] sm:$0xf]
    %v1542 = vld [vmem:[#allocation4 + $0xb0] sm:$0xf]
    %v1543 = vld [vmem:[#allocation4 + $0xb4] sm:$0xf]
    %v1544 = vld [vmem:[#allocation4 + $0xb8] sm:$0xf]
    %v1545 = vld [vmem:[#allocation4 + $0xbc] sm:$0xf]
    %v1546 = vld [vmem:[#allocation4 + $0xc0] sm:$0xf]
    %v1547 = vld [vmem:[#allocation4 + $0xc4] sm:$0xf]
    %v1548 = vld [vmem:[#allocation4 + $0xc8] sm:$0xf]
    %v1549 = vld [vmem:[#allocation4 + $0xcc] sm:$0xf]
    %v1550 = vld [vmem:[#allocation4 + $0xd0] sm:$0xf]
    %v1551 = vld [vmem:[#allocation4 + $0xd4] sm:$0xf]
    %v1552 = vld [vmem:[#allocation4 + $0xd8] sm:$0xf]
    %v1553 = vld [vmem:[#allocation4 + $0xdc] sm:$0xf]
    %v1554 = vld [vmem:[#allocation4 + $0xe0] sm:$0xf]
    %v1555 = vld [vmem:[#allocation4 + $0xe4] sm:$0xf]
    %v1556 = vld [vmem:[#allocation4 + $0xe8] sm:$0xf]
    %v1557 = vld [vmem:[#allocation4 + $0xec] sm:$0xf]
    %v1558 = vld [vmem:[#allocation4 + $0xf0] sm:$0xf]
    %v1559 = vld [vmem:[#allocation4 + $0xf4] sm:$0xf]
    %v1560 = vld [vmem:[#allocation4 + $0xf8] sm:$0xf]
    %v1561 = vld [vmem:[#allocation4 + $0xfc] sm:$0xf]
    %v1562 = vld [vmem:[#allocation4 + $0x100] sm:$0xf]
    %v1563 = vld [vmem:[#allocation4 + $0x104] sm:$0xf]
    %v1564 = vld [vmem:[#allocation4 + $0x108] sm:$0xf]
    %v1565 = vld [vmem:[#allocation4 + $0x10c] sm:$0xf]
    %v1566 = vld [vmem:[#allocation4 + $0x110] sm:$0xf]
    %v1567 = vld [vmem:[#allocation4 + $0x114] sm:$0xf]
    %v1568 = vld [vmem:[#allocation4 + $0x118] sm:$0xf]
    %v1569 = vld [vmem:[#allocation4 + $0x11c] sm:$0xf]
    %v1570 = vld [vmem:[#allocation4 + $0x120] sm:$0xf]
    %v1571 = vld [vmem:[#allocation4 + $0x124] sm:$0xf]
    %v1572 = vld [vmem:[#allocation4 + $0x128] sm:$0xf]
    %v1573 = vld [vmem:[#allocation4 + $0x12c] sm:$0xf]
    %v1574 = vld [vmem:[#allocation4 + $0x130] sm:$0xf]
    %v1575 = vld [vmem:[#allocation4 + $0x134] sm:$0xf]
    %v1576 = vld [vmem:[#allocation4 + $0x138] sm:$0xf]
    %v1577 = vld [vmem:[#allocation4 + $0x13c] sm:$0xf]
    %v1578 = vld [vmem:[#allocation4 + $0x140] sm:$0xf]
    %v1579 = vld [vmem:[#allocation4 + $0x144] sm:$0xf]
    %v1580 = vld [vmem:[#allocation4 + $0x148] sm:$0xf]
    %v1581 = vld [vmem:[#allocation4 + $0x14c] sm:$0xf]
    %v1582 = vld [vmem:[#allocation4 + $0x150] sm:$0xf]
    %v1583 = vld [vmem:[#allocation4 + $0x154] sm:$0xf]
    %v1584 = vld [vmem:[#allocation4 + $0x158] sm:$0xf]
    %v1585 = vld [vmem:[#allocation4 + $0x15c] sm:$0xf]
    %v1586 = vld [vmem:[#allocation4 + $0x160] sm:$0xf]
    %v1587 = vld [vmem:[#allocation4 + $0x164] sm:$0xf]
    %v1588 = vld [vmem:[#allocation4 + $0x168] sm:$0xf]
    %v1589 = vld [vmem:[#allocation4 + $0x16c] sm:$0xf]
    %v1590 = vld [vmem:[#allocation4 + $0x170] sm:$0xf]
    %v1591 = vld [vmem:[#allocation4 + $0x174] sm:$0xf]
    %v1592 = vld [vmem:[#allocation4 + $0x178] sm:$0xf]
    %v1593 = vld [vmem:[#allocation4 + $0x17c] sm:$0xf]
    %v1594 = vld [vmem:[#allocation4 + $0x180] sm:$0xf]
    %v1595 = vld [vmem:[#allocation4 + $0x184] sm:$0xf]
    %v1596 = vld [vmem:[#allocation4 + $0x188] sm:$0xf]
    %v1597 = vld [vmem:[#allocation4 + $0x18c] sm:$0xf]
    %v1598 = vld [vmem:[#allocation4 + $0x190] sm:$0xf]
    %v1599 = vld [vmem:[#allocation4 + $0x194] sm:$0xf]
    %v1600 = vld [vmem:[#allocation4 + $0x198] sm:$0xf]
    %v1601 = vld [vmem:[#allocation4 + $0x19c] sm:$0xf]
    %v1602 = vld [vmem:[#allocation4 + $0x1a0] sm:$0xf]
    %v1603 = vld [vmem:[#allocation4 + $0x1a4] sm:$0xf]
    %v1604 = vld [vmem:[#allocation4 + $0x1a8] sm:$0xf]
    %v1605 = vld [vmem:[#allocation4 + $0x1ac] sm:$0xf]
    %v1606 = vld [vmem:[#allocation4 + $0x1b0] sm:$0xf]
    %v1607 = vld [vmem:[#allocation4 + $0x1b4] sm:$0xf]
    %v1608 = vld [vmem:[#allocation4 + $0x1b8] sm:$0xf]
    %v1609 = vld [vmem:[#allocation4 + $0x1bc] sm:$0xf]
    %v1610 = vld [vmem:[#allocation4 + $0x1c0] sm:$0xf]
    %v1611 = vld [vmem:[#allocation4 + $0x1c4] sm:$0xf]
    %v1612 = vld [vmem:[#allocation4 + $0x1c8] sm:$0xf]
    %v1613 = vld [vmem:[#allocation4 + $0x1cc] sm:$0xf]
    %v1614 = vld [vmem:[#allocation4 + $0x1d0] sm:$0xf]
    %v1615 = vld [vmem:[#allocation4 + $0x1d4] sm:$0xf]
    %v1616 = vld [vmem:[#allocation4 + $0x1d8] sm:$0xf]
    %v1617 = vld [vmem:[#allocation4 + $0x1dc] sm:$0xf]
    %v1618 = vld [vmem:[#allocation4 + $0x1e0] sm:$0xf]
    %v1619 = vld [vmem:[#allocation4 + $0x1e4] sm:$0xf]
    %v1620 = vld [vmem:[#allocation4 + $0x1e8] sm:$0xf]
    %v1621 = vld [vmem:[#allocation4 + $0x1ec] sm:$0xf]
    %v1622 = vld [vmem:[#allocation4 + $0x1f0] sm:$0xf]
    %v1623 = vld [vmem:[#allocation4 + $0x1f4] sm:$0xf]
    %v1624 = vld [vmem:[#allocation4 + $0x1f8] sm:$0xf]
    %v1625 = vld [vmem:[#allocation4 + $0x1fc] sm:$0xf]
    %v1634 = vrot.slane %v1490, 2
    %v1635 = vrot.slane %v1491, 2
    %v1636 = vrot.slane %v1492, 2
    %v1637 = vrot.slane %v1493, 2
    %v1638 = vrot.slane %v1494, 2
    %v1639 = vrot.slane %v1495, 2
    %v1640 = vrot.slane %v1496, 2
    %v1641 = vrot.slane %v1497, 2
    %v1778 = vunpack.c.l.b16 %v1498
    %v1779 = vunpack.c.l.b16 %v1499
    %v1780 = vunpack.c.l.b16 %v1500
    %v1781 = vunpack.c.l.b16 %v1501
    %v1782 = vunpack.c.l.b16 %v1502
    %v1783 = vunpack.c.l.b16 %v1503
    %v1784 = vunpack.c.l.b16 %v1504
    %v1785 = vunpack.c.l.b16 %v1505
    %v1786 = vunpack.c.l.b16 %v1506
    %v1787 = vunpack.c.l.b16 %v1507
    %v1788 = vunpack.c.l.b16 %v1508
    %v1789 = vunpack.c.l.b16 %v1509
    %v1790 = vunpack.c.l.b16 %v1510
    %v1791 = vunpack.c.l.b16 %v1511
    %v1792 = vunpack.c.l.b16 %v1512
    %v1793 = vunpack.c.l.b16 %v1513
    %v1794 = vunpack.c.l.b16 %v1514
    %v1795 = vunpack.c.l.b16 %v1515
    %v1796 = vunpack.c.l.b16 %v1516
    %v1797 = vunpack.c.l.b16 %v1517
    %v1798 = vunpack.c.l.b16 %v1518
    %v1799 = vunpack.c.l.b16 %v1519
    %v1800 = vunpack.c.l.b16 %v1520
    %v1801 = vunpack.c.l.b16 %v1521
    %v1802 = vunpack.c.l.b16 %v1522
    %v1803 = vunpack.c.l.b16 %v1523
    %v1804 = vunpack.c.l.b16 %v1524
    %v1805 = vunpack.c.l.b16 %v1525
    %v1806 = vunpack.c.l.b16 %v1526
    %v1807 = vunpack.c.l.b16 %v1527
    %v1808 = vunpack.c.l.b16 %v1528
    %v1809 = vunpack.c.l.b16 %v1529
    %v1810 = vunpack.c.l.b16 %v1530
    %v1811 = vunpack.c.l.b16 %v1531
    %v1812 = vunpack.c.l.b16 %v1532
    %v1813 = vunpack.c.l.b16 %v1533
    %v1814 = vunpack.c.l.b16 %v1534
    %v1815 = vunpack.c.l.b16 %v1535
    %v1816 = vunpack.c.l.b16 %v1536
    %v1817 = vunpack.c.l.b16 %v1537
    %v1818 = vunpack.c.l.b16 %v1538
    %v1819 = vunpack.c.l.b16 %v1539
    %v1820 = vunpack.c.l.b16 %v1540
    %v1821 = vunpack.c.l.b16 %v1541
    %v1822 = vunpack.c.l.b16 %v1542
    %v1823 = vunpack.c.l.b16 %v1543
    %v1824 = vunpack.c.l.b16 %v1544
    %v1825 = vunpack.c.l.b16 %v1545
    %v1826 = vunpack.c.l.b16 %v1546
    %v1827 = vunpack.c.l.b16 %v1547
    %v1828 = vunpack.c.l.b16 %v1548
    %v1829 = vunpack.c.l.b16 %v1549
    %v1830 = vunpack.c.l.b16 %v1550
    %v1831 = vunpack.c.l.b16 %v1551
    %v1832 = vunpack.c.l.b16 %v1552
    %v1833 = vunpack.c.l.b16 %v1553
    %v1834 = vunpack.c.l.b16 %v1554
    %v1835 = vunpack.c.l.b16 %v1555
    %v1836 = vunpack.c.l.b16 %v1556
    %v1837 = vunpack.c.l.b16 %v1557
    %v1838 = vunpack.c.l.b16 %v1558
    %v1839 = vunpack.c.l.b16 %v1559
    %v1840 = vunpack.c.l.b16 %v1560
    %v1841 = vunpack.c.l.b16 %v1561
    %v1842 = vunpack.c.l.b16 %v1562
    %v1843 = vunpack.c.l.b16 %v1563
    %v1844 = vunpack.c.l.b16 %v1564
    %v1845 = vunpack.c.l.b16 %v1565
    %v1846 = vunpack.c.l.b16 %v1566
    %v1847 = vunpack.c.l.b16 %v1567
    %v1848 = vunpack.c.l.b16 %v1568
    %v1849 = vunpack.c.l.b16 %v1569
    %v1850 = vunpack.c.l.b16 %v1570
    %v1851 = vunpack.c.l.b16 %v1571
    %v1852 = vunpack.c.l.b16 %v1572
    %v1853 = vunpack.c.l.b16 %v1573
    %v1854 = vunpack.c.l.b16 %v1574
    %v1855 = vunpack.c.l.b16 %v1575
    %v1856 = vunpack.c.l.b16 %v1576
    %v1857 = vunpack.c.l.b16 %v1577
    %v1858 = vunpack.c.l.b16 %v1578
    %v1859 = vunpack.c.l.b16 %v1579
    %v1860 = vunpack.c.l.b16 %v1580
    %v1861 = vunpack.c.l.b16 %v1581
    %v1862 = vunpack.c.l.b16 %v1582
    %v1863 = vunpack.c.l.b16 %v1583
    %v1864 = vunpack.c.l.b16 %v1584
    %v1865 = vunpack.c.l.b16 %v1585
    %v1866 = vunpack.c.l.b16 %v1586
    %v1867 = vunpack.c.l.b16 %v1587
    %v1868 = vunpack.c.l.b16 %v1588
    %v1869 = vunpack.c.l.b16 %v1589
    %v1870 = vunpack.c.l.b16 %v1590
    %v1871 = vunpack.c.l.b16 %v1591
    %v1872 = vunpack.c.l.b16 %v1592
    %v1873 = vunpack.c.l.b16 %v1593
    %v1874 = vunpack.c.l.b16 %v1594
    %v1875 = vunpack.c.l.b16 %v1595
    %v1876 = vunpack.c.l.b16 %v1596
    %v1877 = vunpack.c.l.b16 %v1597
    %v1878 = vunpack.c.l.b16 %v1598
    %v1879 = vunpack.c.l.b16 %v1599
    %v1880 = vunpack.c.l.b16 %v1600
    %v1881 = vunpack.c.l.b16 %v1601
    %v1882 = vunpack.c.l.b16 %v1602
    %v1883 = vunpack.c.l.b16 %v1603
    %v1884 = vunpack.c.l.b16 %v1604
    %v1885 = vunpack.c.l.b16 %v1605
    %v1886 = vunpack.c.l.b16 %v1606
    %v1887 = vunpack.c.l.b16 %v1607
    %v1888 = vunpack.c.l.b16 %v1608
    %v1889 = vunpack.c.l.b16 %v1609
    %v1890 = vunpack.c.l.b16 %v1610
    %v1891 = vunpack.c.l.b16 %v1611
    %v1892 = vunpack.c.l.b16 %v1612
    %v1893 = vunpack.c.l.b16 %v1613
    %v1894 = vunpack.c.l.b16 %v1614
    %v1895 = vunpack.c.l.b16 %v1615
    %v1896 = vunpack.c.l.b16 %v1616
    %v1897 = vunpack.c.l.b16 %v1617
    %v1898 = vunpack.c.l.b16 %v1618
    %v1899 = vunpack.c.l.b16 %v1619
    %v1900 = vunpack.c.l.b16 %v1620
    %v1901 = vunpack.c.l.b16 %v1621
    %v1902 = vunpack.c.l.b16 %v1622
    %v1903 = vunpack.c.l.b16 %v1623
    %v1904 = vunpack.c.l.b16 %v1624
    %v1905 = vunpack.c.l.b16 %v1625
    %v1906 = vpack.c.b16 %v1779, %v1778
    %v1907 = vpack.c.b16 %v1781, %v1780
    %v1908 = vpack.c.b16 %v1783, %v1782
    %v1909 = vpack.c.b16 %v1785, %v1784
    %v1910 = vpack.c.b16 %v1787, %v1786
    %v1911 = vpack.c.b16 %v1789, %v1788
    %v1912 = vpack.c.b16 %v1791, %v1790
    %v1913 = vpack.c.b16 %v1793, %v1792
    %v1914 = vpack.c.b16 %v1795, %v1794
    %v1915 = vpack.c.b16 %v1797, %v1796
    %v1916 = vpack.c.b16 %v1799, %v1798
    %v1917 = vpack.c.b16 %v1801, %v1800
    %v1918 = vpack.c.b16 %v1803, %v1802
    %v1919 = vpack.c.b16 %v1805, %v1804
    %v1920 = vpack.c.b16 %v1807, %v1806
    %v1921 = vpack.c.b16 %v1809, %v1808
    %v1922 = vpack.c.b16 %v1811, %v1810
    %v1923 = vpack.c.b16 %v1813, %v1812
    %v1924 = vpack.c.b16 %v1815, %v1814
    %v1925 = vpack.c.b16 %v1817, %v1816
    %v1926 = vpack.c.b16 %v1819, %v1818
    %v1927 = vpack.c.b16 %v1821, %v1820
    %v1928 = vpack.c.b16 %v1823, %v1822
    %v1929 = vpack.c.b16 %v1825, %v1824
    %v1930 = vpack.c.b16 %v1827, %v1826
    %v1931 = vpack.c.b16 %v1829, %v1828
    %v1932 = vpack.c.b16 %v1831, %v1830
    %v1933 = vpack.c.b16 %v1833, %v1832
    %v1934 = vpack.c.b16 %v1835, %v1834
    %v1935 = vpack.c.b16 %v1837, %v1836
    %v1936 = vpack.c.b16 %v1839, %v1838
    %v1937 = vpack.c.b16 %v1841, %v1840
    %v1938 = vpack.c.b16 %v1843, %v1842
    %v1939 = vpack.c.b16 %v1845, %v1844
    %v1940 = vpack.c.b16 %v1847, %v1846
    %v1941 = vpack.c.b16 %v1849, %v1848
    %v1942 = vpack.c.b16 %v1851, %v1850
    %v1943 = vpack.c.b16 %v1853, %v1852
    %v1944 = vpack.c.b16 %v1855, %v1854
    %v1945 = vpack.c.b16 %v1857, %v1856
    %v1946 = vpack.c.b16 %v1859, %v1858
    %v1947 = vpack.c.b16 %v1861, %v1860
    %v1948 = vpack.c.b16 %v1863, %v1862
    %v1949 = vpack.c.b16 %v1865, %v1864
    %v1950 = vpack.c.b16 %v1867, %v1866
    %v1951 = vpack.c.b16 %v1869, %v1868
    %v1952 = vpack.c.b16 %v1871, %v1870
    %v1953 = vpack.c.b16 %v1873, %v1872
    %v1954 = vpack.c.b16 %v1875, %v1874
    %v1955 = vpack.c.b16 %v1877, %v1876
    %v1956 = vpack.c.b16 %v1879, %v1878
    %v1957 = vpack.c.b16 %v1881, %v1880
    %v1958 = vpack.c.b16 %v1883, %v1882
    %v1959 = vpack.c.b16 %v1885, %v1884
    %v1960 = vpack.c.b16 %v1887, %v1886
    %v1961 = vpack.c.b16 %v1889, %v1888
    %v1962 = vpack.c.b16 %v1891, %v1890
    %v1963 = vpack.c.b16 %v1893, %v1892
    %v1964 = vpack.c.b16 %v1895, %v1894
    %v1965 = vpack.c.b16 %v1897, %v1896
    %v1966 = vpack.c.b16 %v1899, %v1898
    %v1967 = vpack.c.b16 %v1901, %v1900
    %v1968 = vpack.c.b16 %v1903, %v1902
    %v1969 = vpack.c.b16 %v1905, %v1904
    %2034 = vmatprep.subr.bf16.mxu0 0
    %2035 = vmatpush1.bf16.msra.mxu0 %v1906
    %2036 = vmatprep.subr.bf16.mxu0 0
    %2037 = vmatpush1.bf16.msra.mxu0 %v1907
    %2038 = vmatprep.subr.bf16.mxu0 0
    %2039 = vmatpush1.bf16.msra.mxu0 %v1908
    %2040 = vmatprep.subr.bf16.mxu0 0
    %2041 = vmatpush1.bf16.msra.mxu0 %v1909
    %2042 = vmatprep.subr.bf16.mxu0 0
    %2043 = vmatpush1.bf16.msra.mxu0 %v1910
    %2044 = vmatprep.subr.bf16.mxu0 0
    %2045 = vmatpush1.bf16.msra.mxu0 %v1911
    %2046 = vmatprep.subr.bf16.mxu0 0
    %2047 = vmatpush1.bf16.msra.mxu0 %v1912
    %2048 = vmatprep.subr.bf16.mxu0 0
    %2049 = vmatpush1.bf16.msra.mxu0 %v1913
    %2050 = vmatprep.subr.bf16.mxu0 0
    %2051 = vmatpush1.bf16.msra.mxu0 %v1914
    %2052 = vmatprep.subr.bf16.mxu0 0
    %2053 = vmatpush1.bf16.msra.mxu0 %v1915
    %2054 = vmatprep.subr.bf16.mxu0 0
    %2055 = vmatpush1.bf16.msra.mxu0 %v1916
    %2056 = vmatprep.subr.bf16.mxu0 0
    %2057 = vmatpush1.bf16.msra.mxu0 %v1917
    %2058 = vmatprep.subr.bf16.mxu0 0
    %2059 = vmatpush1.bf16.msra.mxu0 %v1918
    %2060 = vmatprep.subr.bf16.mxu0 0
    %2061 = vmatpush1.bf16.msra.mxu0 %v1919
    %2062 = vmatprep.subr.bf16.mxu0 0
    %2063 = vmatpush1.bf16.msra.mxu0 %v1920
    %2064 = vmatprep.subr.bf16.mxu0 0
    %2065 = vmatpush1.bf16.msra.mxu0 %v1921
    %2066 = vmatprep.mubr.bf16.mxu0 %v1635
    %2067 = vmatmul.mubr.bf16.gmra.mrb[0].mxu0 %v1634
    %v2068 = vpop.f32.mrb[0].mxu0
    %v2069 = vadd.f32 %v378, %v2068
    %v2070 = vpop.f32.mrb[0].mxu0
    %v2071 = vpop.f32.mrb[0].mxu0
    %v2072 = vpop.f32.mrb[0].mxu0
    %2073 = vdwg.mxu0
    %2074 = vmatprep.subr.bf16.mxu0 0
    %2075 = vmatpush1.bf16.msra.mxu0 %v1922
    %2076 = vmatprep.subr.bf16.mxu0 0
    %2077 = vmatpush1.bf16.msra.mxu0 %v1923
    %2078 = vmatprep.subr.bf16.mxu0 0
    %2079 = vmatpush1.bf16.msra.mxu0 %v1924
    %2080 = vmatprep.subr.bf16.mxu0 0
    %2081 = vmatpush1.bf16.msra.mxu0 %v1925
    %2082 = vmatprep.subr.bf16.mxu0 0
    %2083 = vmatpush1.bf16.msra.mxu0 %v1926
    %2084 = vmatprep.subr.bf16.mxu0 0
    %2085 = vmatpush1.bf16.msra.mxu0 %v1927
    %2086 = vmatprep.subr.bf16.mxu0 0
    %2087 = vmatpush1.bf16.msra.mxu0 %v1928
    %2088 = vmatprep.subr.bf16.mxu0 0
    %2089 = vmatpush1.bf16.msra.mxu0 %v1929
    %2090 = vmatprep.subr.bf16.mxu0 0
    %2091 = vmatpush1.bf16.msra.mxu0 %v1930
    %2092 = vmatprep.subr.bf16.mxu0 0
    %2093 = vmatpush1.bf16.msra.mxu0 %v1931
    %2094 = vmatprep.subr.bf16.mxu0 0
    %2095 = vmatpush1.bf16.msra.mxu0 %v1932
    %2096 = vmatprep.subr.bf16.mxu0 0
    %2097 = vmatpush1.bf16.msra.mxu0 %v1933
    %2098 = vmatprep.subr.bf16.mxu0 0
    %2099 = vmatpush1.bf16.msra.mxu0 %v1934
    %2100 = vmatprep.subr.bf16.mxu0 0
    %2101 = vmatpush1.bf16.msra.mxu0 %v1935
    %2102 = vmatprep.subr.bf16.mxu0 0
    %2103 = vmatpush1.bf16.msra.mxu0 %v1936
    %2104 = vmatprep.subr.bf16.mxu0 0
    %2105 = vmatpush1.bf16.msra.mxu0 %v1937
    %2106 = vmatprep.mubr.bf16.mxu0 %v1637
    %2107 = vmatmul.mubr.bf16.gmra.mrb[0].mxu0 %v1636
    %v2108 = vpop.f32.mrb[0].mxu0
    %v2109 = vadd.f32 %v2069, %v2108
    %v2110 = vpop.f32.mrb[0].mxu0
    %v2111 = vpop.f32.mrb[0].mxu0
    %v2112 = vpop.f32.mrb[0].mxu0
    %2113 = vdwg.mxu0
    %2114 = vmatprep.subr.bf16.mxu0 0
    %2115 = vmatpush1.bf16.msra.mxu0 %v1938
    %2116 = vmatprep.subr.bf16.mxu0 0
    %2117 = vmatpush1.bf16.msra.mxu0 %v1939
    %2118 = vmatprep.subr.bf16.mxu0 0
    %2119 = vmatpush1.bf16.msra.mxu0 %v1940
    %2120 = vmatprep.subr.bf16.mxu0 0
    %2121 = vmatpush1.bf16.msra.mxu0 %v1941
    %2122 = vmatprep.subr.bf16.mxu0 0
    %2123 = vmatpush1.bf16.msra.mxu0 %v1942
    %2124 = vmatprep.subr.bf16.mxu0 0
    %2125 = vmatpush1.bf16.msra.mxu0 %v1943
    %2126 = vmatprep.subr.bf16.mxu0 0
    %2127 = vmatpush1.bf16.msra.mxu0 %v1944
    %2128 = vmatprep.subr.bf16.mxu0 0
    %2129 = vmatpush1.bf16.msra.mxu0 %v1945
    %2130 = vmatprep.subr.bf16.mxu0 0
    %2131 = vmatpush1.bf16.msra.mxu0 %v1946
    %2132 = vmatprep.subr.bf16.mxu0 0
    %2133 = vmatpush1.bf16.msra.mxu0 %v1947
    %2134 = vmatprep.subr.bf16.mxu0 0
    %2135 = vmatpush1.bf16.msra.mxu0 %v1948
    %2136 = vmatprep.subr.bf16.mxu0 0
    %2137 = vmatpush1.bf16.msra.mxu0 %v1949
    %2138 = vmatprep.subr.bf16.mxu0 0
    %2139 = vmatpush1.bf16.msra.mxu0 %v1950
    %2140 = vmatprep.subr.bf16.mxu0 0
    %2141 = vmatpush1.bf16.msra.mxu0 %v1951
    %2142 = vmatprep.subr.bf16.mxu0 0
    %2143 = vmatpush1.bf16.msra.mxu0 %v1952
    %2144 = vmatprep.subr.bf16.mxu0 0
    %2145 = vmatpush1.bf16.msra.mxu0 %v1953
    %2146 = vmatprep.mubr.bf16.mxu0 %v1639
    %2147 = vmatmul.mubr.bf16.gmra.mrb[0].mxu0 %v1638
    %v2148 = vpop.f32.mrb[0].mxu0
    %v2149 = vadd.f32 %v2109, %v2148
    %v2150 = vpop.f32.mrb[0].mxu0
    %v2151 = vpop.f32.mrb[0].mxu0
    %v2152 = vpop.f32.mrb[0].mxu0
    %2153 = vdwg.mxu0
    %2154 = vmatprep.subr.bf16.mxu0 0
    %2155 = vmatpush1.bf16.msra.mxu0 %v1954
    %2156 = vmatprep.subr.bf16.mxu0 0
    %2157 = vmatpush1.bf16.msra.mxu0 %v1955
    %2158 = vmatprep.subr.bf16.mxu0 0
    %2159 = vmatpush1.bf16.msra.mxu0 %v1956
    %2160 = vmatprep.subr.bf16.mxu0 0
    %2161 = vmatpush1.bf16.msra.mxu0 %v1957
    %2162 = vmatprep.subr.bf16.mxu0 0
    %2163 = vmatpush1.bf16.msra.mxu0 %v1958
    %2164 = vmatprep.subr.bf16.mxu0 0
    %2165 = vmatpush1.bf16.msra.mxu0 %v1959
    %2166 = vmatprep.subr.bf16.mxu0 0
    %2167 = vmatpush1.bf16.msra.mxu0 %v1960
    %2168 = vmatprep.subr.bf16.mxu0 0
    %2169 = vmatpush1.bf16.msra.mxu0 %v1961
    %2170 = vmatprep.subr.bf16.mxu0 0
    %2171 = vmatpush1.bf16.msra.mxu0 %v1962
    %2172 = vmatprep.subr.bf16.mxu0 0
    %2173 = vmatpush1.bf16.msra.mxu0 %v1963
    %2174 = vmatprep.subr.bf16.mxu0 0
    %2175 = vmatpush1.bf16.msra.mxu0 %v1964
    %2176 = vmatprep.subr.bf16.mxu0 0
    %2177 = vmatpush1.bf16.msra.mxu0 %v1965
    %2178 = vmatprep.subr.bf16.mxu0 0
    %2179 = vmatpush1.bf16.msra.mxu0 %v1966
    %2180 = vmatprep.subr.bf16.mxu0 0
    %2181 = vmatpush1.bf16.msra.mxu0 %v1967
    %2182 = vmatprep.subr.bf16.mxu0 0
    %2183 = vmatpush1.bf16.msra.mxu0 %v1968
    %2184 = vmatprep.subr.bf16.mxu0 0
    %2185 = vmatpush1.bf16.msra.mxu0 %v1969
    %2186 = vmatprep.mubr.bf16.mxu0 %v1641
    %2187 = vmatmul.mubr.bf16.gmra.mrb[0].mxu0 %v1640
    %v2188 = vpop.f32.mrb[0].mxu0
    %v2189 = vadd.f32 %v2149, %v2188
    %v2190 = vpop.f32.mrb[0].mxu0
    %v2191 = vpop.f32.mrb[0].mxu0
    %v2192 = vpop.f32.mrb[0].mxu0
    %2193 = vdwg.mxu0
    %v2194 = vmax.f32 %v2189, 0.0
    %v2195 = vpack.c.bf16 %v2194, %v2194
    %v2196 = vld [vmem:[#allocation4 + $0x200] sm:$0xf]
    %v2197 = vld [vmem:[#allocation4 + $0x204] sm:$0xf]
    %v2198 = vld [vmem:[#allocation4 + $0x208] sm:$0xf]
    %v2199 = vld [vmem:[#allocation4 + $0x20c] sm:$0xf]
    %v2200 = vld [vmem:[#allocation4 + $0x210] sm:$0xf]
    %v2201 = vld [vmem:[#allocation4 + $0x214] sm:$0xf]
    %v2202 = vld [vmem:[#allocation4 + $0x218] sm:$0xf]
    %v2203 = vld [vmem:[#allocation4 + $0x21c] sm:$0xf]
    %v2204 = vld [vmem:[#allocation4 + $0x220] sm:$0xf]
    %v2205 = vld [vmem:[#allocation4 + $0x224] sm:$0xf]
    %v2206 = vld [vmem:[#allocation4 + $0x228] sm:$0xf]
    %v2207 = vld [vmem:[#allocation4 + $0x22c] sm:$0xf]
    %v2208 = vld [vmem:[#allocation4 + $0x230] sm:$0xf]
    %v2209 = vld [vmem:[#allocation4 + $0x234] sm:$0xf]
    %v2210 = vld [vmem:[#allocation4 + $0x238] sm:$0xf]
    %v2211 = vld [vmem:[#allocation4 + $0x23c] sm:$0xf]
    %v2228 = vunpack.c.l.b16 %v2196
    %v2229 = vunpack.c.l.b16 %v2197
    %v2230 = vunpack.c.l.b16 %v2198
    %v2231 = vunpack.c.l.b16 %v2199
    %v2232 = vunpack.c.l.b16 %v2200
    %v2233 = vunpack.c.l.b16 %v2201
    %v2234 = vunpack.c.l.b16 %v2202
    %v2235 = vunpack.c.l.b16 %v2203
    %v2236 = vunpack.c.l.b16 %v2204
    %v2237 = vunpack.c.l.b16 %v2205
    %v2238 = vunpack.c.l.b16 %v2206
    %v2239 = vunpack.c.l.b16 %v2207
    %v2240 = vunpack.c.l.b16 %v2208
    %v2241 = vunpack.c.l.b16 %v2209
    %v2242 = vunpack.c.l.b16 %v2210
    %v2243 = vunpack.c.l.b16 %v2211
    %v2244 = vpack.c.b16 %v2229, %v2228
    %v2245 = vpack.c.b16 %v2231, %v2230
    %v2246 = vpack.c.b16 %v2233, %v2232
    %v2247 = vpack.c.b16 %v2235, %v2234
    %v2248 = vpack.c.b16 %v2237, %v2236
    %v2249 = vpack.c.b16 %v2239, %v2238
    %v2250 = vpack.c.b16 %v2241, %v2240
    %v2251 = vpack.c.b16 %v2243, %v2242
    %2260 = vmatprep.subr.bf16.mxu0 0
    %2261 = vmatpush1.bf16.msra.mxu0 %v2244
    %2262 = vmatprep.subr.bf16.mxu0 0
    %2263 = vmatpush1.bf16.msra.mxu0 %v2245
    %2264 = vmatprep.subr.bf16.mxu0 0
    %2265 = vmatpush1.bf16.msra.mxu0 %v2246
    %2266 = vmatprep.subr.bf16.mxu0 0
    %2267 = vmatpush1.bf16.msra.mxu0 %v2247
    %2268 = vmatprep.subr.bf16.mxu0 0
    %2269 = vmatpush1.bf16.msra.mxu0 %v2248
    %2270 = vmatprep.subr.bf16.mxu0 0
    %2271 = vmatpush1.bf16.msra.mxu0 %v2249
    %2272 = vmatprep.subr.bf16.mxu0 0
    %2273 = vmatpush1.bf16.msra.mxu0 %v2250
    %2274 = vmatprep.subr.bf16.mxu0 0
    %2275 = vmatpush1.bf16.msra.mxu0 %v2251
    %2276 = vmatprep.subr.bf16.mxu0 0
    %2277 = vmatpush1.bf16.msra.mxu0 0
    %2278 = vmatprep.subr.bf16.mxu0 0
    %2279 = vmatpush1.bf16.msra.mxu0 0
    %2280 = vmatprep.subr.bf16.mxu0 0
    %2281 = vmatpush1.bf16.msra.mxu0 0
    %2282 = vmatprep.subr.bf16.mxu0 0
    %2283 = vmatpush1.bf16.msra.mxu0 0
    %2284 = vmatprep.subr.bf16.mxu0 0
    %2285 = vmatpush1.bf16.msra.mxu0 0
    %2286 = vmatprep.subr.bf16.mxu0 0
    %2287 = vmatpush1.bf16.msra.mxu0 0
    %2288 = vmatprep.subr.bf16.mxu0 0
    %2289 = vmatpush1.bf16.msra.mxu0 0
    %2290 = vmatprep.subr.bf16.mxu0 0
    %2291 = vmatpush1.bf16.msra.mxu0 0
    %2292 = vmatprep.mubr.bf16.mxu0 0
    %2293 = vmatmul.mubr.bf16.gmra.mrb[0].mxu0 %v2195
    %v2294 = vpop.f32.mrb[0].mxu0
    %v2295 = vadd.f32 %v944, %v2294
    %v2296 = vpop.f32.mrb[0].mxu0
    %v2297 = vpop.f32.mrb[0].mxu0
    %v2298 = vpop.f32.mrb[0].mxu0
    %2299 = vdwg.mxu0
    %v2301 = vrot.slane %v2295, 2
    %v2303 = vsel %vm1048, %v1028, %v2301
    %2304 = vst [vmem:[%s8] sm:$0xff] %v2303
    %2305 = vst [vmem:[%s8 + $0x8] sm:$0x3] %v2301
    // Predicated region
    $region30: #{dlr_autoencoder_forward.1} parent=1 // pred_check
      _
    $region31: #{dlr_autoencoder_forward.1} parent=1 // pred_check_branch
      %2307 = sbr.rel (0) target = $region33
    $region32: #{dlr_autoencoder_forward.1} parent=1 // pred_region
      _
    $region33: #{dlr_autoencoder_forward.1} parent=1 // pred_fallthru
      _
    // Predicated region
    $region34: #{dlr_autoencoder_forward.1} parent=1 // pred_check
      _
    $region35: #{dlr_autoencoder_forward.1} parent=1 // pred_check_branch
      %2309 = sbr.rel (0) target = $region37
    $region36: #{dlr_autoencoder_forward.1} parent=1 // pred_region
      _
    $region37: #{dlr_autoencoder_forward.1} parent=1 // pred_fallthru
      _
    // Predicated region
    $region38: #{dlr_autoencoder_forward.1} parent=1 // pred_check
      _
    $region39: #{dlr_autoencoder_forward.1} parent=1 // pred_check_branch
      %2311 = sbr.rel (0) target = $region41
    $region40: #{dlr_autoencoder_forward.1} parent=1 // pred_region
      _
    $region41: #{dlr_autoencoder_forward.1} parent=1 // pred_fallthru
      _
    // Predicated region
    $region42: #{dlr_autoencoder_forward.1} parent=1 // pred_check
      _
    $region43: #{dlr_autoencoder_forward.1} parent=1 // pred_check_branch
      %2313 = sbr.rel (0) target = $region45
    $region44: #{dlr_autoencoder_forward.1} parent=1 // pred_region
      _
    $region45: #{dlr_autoencoder_forward.1} parent=1 // pred_fallthru
      _
    %2314 = vsyncpa [#allocation5], 1
  %2315 = vsyncmov [#allocation3]
  %s2316 = vpop.sfrf %2315
  %p2317 = scmp.eq.s32.totalorder %s2316, 0
  %p2318 = pneg %p2317
  %2320 = shalt.err (%p2318)

</llo_original>
